<compile_context>
chip_gen: v7x
topology: tpu7x:2x2x1
jax: 0.10.0
libtpu: 0.0.40
codegen_flags: <defaults>
</compile_context>

<pallas_src>
import math
import jax
import jax.numpy as jnp
from jax.experimental import pallas as pl
from jax.experimental.pallas import tpu as pltpu

# Logical layer widths of the autoencoder and their lane-aligned (128-multiple) pads.
DIMS = [256, 300, 100, 20, 100, 300, 256]
PDIMS = [256, 384, 128, 128, 128, 384, 256]


def _round_up(x, m):
    return ((x + m - 1) // m) * m


def ae_tanh_kernel(x_ref, w1_ref, w2_ref, w3_ref, w4_ref, w5_ref, w6_ref, o_ref):
    # Entire forward chain fused: 6 MXU matmuls + 5 tanh, all resident in VMEM.
    # Matmul inputs stay in the weight dtype (bf16 fast path); accumulation is f32.
    wdt = w1_ref.dtype
    h = x_ref[...].astype(wdt)
    for w_ref in (w1_ref, w2_ref, w3_ref, w4_ref, w5_ref):
        acc = jnp.dot(h, w_ref[...], preferred_element_type=jnp.float32)
        # tanh in the weight dtype: fewer EUP pushes and no separate f32->bf16 cast.
        h = jnp.tanh(acc.astype(wdt))
    o_ref[...] = jnp.dot(h, w6_ref[...], preferred_element_type=jnp.float32).astype(o_ref.dtype)


def prepare_weights(weights, *, use_bf16=True):
    """One-time prep (hoist out of the per-call path): zero-pad each (in, out)
    weight to its lane-aligned shape and cast. bf16 is the fast MXU path on
    v5e/v6e/v7x alike; accumulation inside the kernel is always f32."""
    wdt = jnp.bfloat16 if use_bf16 else jnp.float32
    padded = []
    for k, w in enumerate(weights):
        pin, pout = PDIMS[k], PDIMS[k + 1]
        wp = jnp.zeros((pin, pout), jnp.float32).at[: w.shape[0], : w.shape[1]].set(w)
        padded.append(wp.astype(wdt))
    return padded


def _pick_batch_tile(B, requested):
    """Rows per grid step. Keep >= 4 grid steps when possible (2 per v7x TC so
    block DMAs pipeline behind compute), never below 128 for large batches, and
    a single sublane-aligned block for tiny batches."""
    t = requested
    while t > 128 and pl.cdiv(B, t) < 4:
        t //= 2
    if B <= t:
        t = max(_round_up(B, 8), 8)
    return t


def ae_tanh_forward(x, w_pad, *, batch_tile=512, out_dtype=jnp.float32):
    """x: (B, 256); w_pad: output of prepare_weights (6 padded (in, out) arrays).

    batch_tile: rows per grid step (sweep 512/1024/2048 for very large batches).
    out_dtype:  jnp.float32 (default) or jnp.bfloat16 to cut output HBM traffic.
    """
    B, F = x.shape
    assert F == DIMS[0]
    assert len(w_pad) == 6

    tile = _pick_batch_tile(B, batch_tile)
    grid = (pl.cdiv(B, tile),)  # no batch padding: ragged last block is masked

    # x / out tiled along batch; weights use full-array blocks with a constant
    # index_map, so they are DMA'd once and stay resident across all grid steps.
    x_spec = pl.BlockSpec((tile, PDIMS[0]), lambda i: (i, 0))
    w_specs = [pl.BlockSpec((PDIMS[k], PDIMS[k + 1]), lambda i: (0, 0)) for k in range(6)]
    out_spec = pl.BlockSpec((tile, PDIMS[-1]), lambda i: (i, 0))

    flops = 2 * B * sum(PDIMS[k] * PDIMS[k + 1] for k in range(6))
    transcendentals = B * sum(PDIMS[1:6])
    bytes_accessed = (
        B * PDIMS[0] * x.dtype.itemsize                     # input
        + B * PDIMS[-1] * jnp.dtype(out_dtype).itemsize     # output
        + sum(w.size * w.dtype.itemsize for w in w_pad)     # weights (once)
    )

    return pl.pallas_call(
        ae_tanh_kernel,
        out_shape=jax.ShapeDtypeStruct((B, PDIMS[-1]), out_dtype),
        grid_spec=pltpu.PrefetchScalarGridSpec(
            num_scalar_prefetch=0,
            grid=grid,
            in_specs=[x_spec] + w_specs,
            out_specs=out_spec,
        ),
        compiler_params=pltpu.CompilerParams(
            dimension_semantics=("parallel",),  # batch tiles shard across v7x's 2 TCs
        ),
        cost_estimate=pl.CostEstimate(
            flops=flops,
            transcendentals=transcendentals,
            bytes_accessed=bytes_accessed,
        ),
    )(x, *w_pad)


def init_weights(key):
    """Deterministic synthetic init matching nn.init.uniform_(-1/sqrt(in), 1/sqrt(in)).
    Stored as (in_features, out_features), unpadded f32."""
    weights = []
    for k in range(6):
        fan_in, fan_out = DIMS[k], DIMS[k + 1]
        key, sub = jax.random.split(key)
        bound = 1.0 / math.sqrt(fan_in)
        w = jax.random.uniform(
            sub, (fan_in, fan_out), dtype=jnp.float32, minval=-bound, maxval=bound
        )
        weights.append(w)
    return weights


def reference_forward(x, weights):
    h = x
    for k in range(5):
        h = jnp.tanh(h @ weights[k])
    return h @ weights[5]


if __name__ == "__main__":
    key = jax.random.PRNGKey(0)
    kx, kw = jax.random.split(key)

    B = 40  # small batch; feature width 256 is fixed by the module
    x = jax.random.normal(kx, (B, DIMS[0]), dtype=jnp.float32)
    weights = init_weights(kw)

    ref = reference_forward(x, weights)

    # f32 path with a tiny explicit tile -> 3-step grid with a ragged last block
    # (exercises the no-pad / cdiv-grid masking); tight check vs. pure-JAX ref.
    w_f32 = prepare_weights(weights, use_bf16=False)
    out_f32 = jax.block_until_ready(ae_tanh_forward(x, w_f32, batch_tile=16))
    assert out_f32.shape == (B, DIMS[-1])
    assert jnp.allclose(out_f32, ref, atol=1e-4, rtol=1e-4)

    # bf16 fast path (default on v5e/v6e/v7x): loose check vs. the f32 reference.
    w_bf16 = prepare_weights(weights, use_bf16=True)
    out_bf16 = jax.block_until_ready(ae_tanh_forward(x, w_bf16))
    assert out_bf16.shape == (B, DIMS[-1])
    assert jnp.allclose(out_bf16.astype(jnp.float32), ref, atol=1e-1, rtol=1e-1)

    print("KERNEL_OK")
</pallas_src>

<mosaic_0001>
module attributes {stable_mosaic.version = 11 : i64} {
  func.func @ae_tanh_kernel(%arg0: i32, %arg1: memref<16x256xf32, #tpu.memory_space<vmem>>, %arg2: memref<256x384xf32, #tpu.memory_space<vmem>>, %arg3: memref<384x128xf32, #tpu.memory_space<vmem>>, %arg4: memref<128x128xf32, #tpu.memory_space<vmem>>, %arg5: memref<128x128xf32, #tpu.memory_space<vmem>>, %arg6: memref<128x384xf32, #tpu.memory_space<vmem>>, %arg7: memref<384x256xf32, #tpu.memory_space<vmem>>, %arg8: memref<16x256xf32, #tpu.memory_space<vmem>>) attributes {dimension_semantics = [#tpu.dimension_semantics<parallel>], iteration_bounds = array<i64: 3>, scalar_prefetch = 0 : i64, scratch_operands = 0 : i64, tpu.core_type = #tpu.core_type<tc>, window_params = [{transform_indices = @transform_0, window_bounds = array<i64: 16, 256>}, {pipeline_mode = #tpu.pipeline_mode<synchronous>, transform_indices = @transform_1, window_bounds = array<i64: 256, 384>}, {pipeline_mode = #tpu.pipeline_mode<synchronous>, transform_indices = @transform_2, window_bounds = array<i64: 384, 128>}, {pipeline_mode = #tpu.pipeline_mode<synchronous>, transform_indices = @transform_3, window_bounds = array<i64: 128, 128>}, {pipeline_mode = #tpu.pipeline_mode<synchronous>, transform_indices = @transform_4, window_bounds = array<i64: 128, 128>}, {pipeline_mode = #tpu.pipeline_mode<synchronous>, transform_indices = @transform_5, window_bounds = array<i64: 128, 384>}, {pipeline_mode = #tpu.pipeline_mode<synchronous>, transform_indices = @transform_6, window_bounds = array<i64: 384, 256>}, {transform_indices = @transform_7, window_bounds = array<i64: 16, 256>}]} {
    %c0 = arith.constant 0 : index
    %c0_0 = arith.constant 0 : index
    %0 = vector.load %arg1[%c0, %c0_0] : memref<16x256xf32, #tpu.memory_space<vmem>>, vector<16x256xf32>
    %c0_1 = arith.constant 0 : index
    %c0_2 = arith.constant 0 : index
    %1 = vector.load %arg2[%c0_1, %c0_2] : memref<256x384xf32, #tpu.memory_space<vmem>>, vector<256x384xf32>
    %cst = arith.constant dense<0.000000e+00> : vector<16x384xf32>
    %2 = tpu.matmul %0, %1, %cst {dimension_numbers = #tpu.dot_dimension_numbers<[1], [0], [0], [1], [0, 0, 1, 1], [], []>} : vector<16x256xf32>, vector<256x384xf32>, vector<16x384xf32> -> vector<16x384xf32>
    %3 = math.tanh %2 : vector<16x384xf32>
    %c0_3 = arith.constant 0 : index
    %c0_4 = arith.constant 0 : index
    %4 = vector.load %arg3[%c0_3, %c0_4] : memref<384x128xf32, #tpu.memory_space<vmem>>, vector<384x128xf32>
    %cst_5 = arith.constant dense<0.000000e+00> : vector<16x128xf32>
    %5 = tpu.matmul %3, %4, %cst_5 {dimension_numbers = #tpu.dot_dimension_numbers<[1], [0], [0], [1], [0, 0, 1, 1], [], []>} : vector<16x384xf32>, vector<384x128xf32>, vector<16x128xf32> -> vector<16x128xf32>
    %6 = math.tanh %5 : vector<16x128xf32>
    %c0_6 = arith.constant 0 : index
    %c0_7 = arith.constant 0 : index
    %7 = vector.load %arg4[%c0_6, %c0_7] : memref<128x128xf32, #tpu.memory_space<vmem>>, vector<128x128xf32>
    %cst_8 = arith.constant dense<0.000000e+00> : vector<16x128xf32>
    %8 = tpu.matmul %6, %7, %cst_8 {dimension_numbers = #tpu.dot_dimension_numbers<[1], [0], [0], [1], [0, 0, 1, 1], [], []>} : vector<16x128xf32>, vector<128x128xf32>, vector<16x128xf32> -> vector<16x128xf32>
    %9 = math.tanh %8 : vector<16x128xf32>
    %c0_9 = arith.constant 0 : index
    %c0_10 = arith.constant 0 : index
    %10 = vector.load %arg5[%c0_9, %c0_10] : memref<128x128xf32, #tpu.memory_space<vmem>>, vector<128x128xf32>
    %cst_11 = arith.constant dense<0.000000e+00> : vector<16x128xf32>
    %11 = tpu.matmul %9, %10, %cst_11 {dimension_numbers = #tpu.dot_dimension_numbers<[1], [0], [0], [1], [0, 0, 1, 1], [], []>} : vector<16x128xf32>, vector<128x128xf32>, vector<16x128xf32> -> vector<16x128xf32>
    %12 = math.tanh %11 : vector<16x128xf32>
    %c0_12 = arith.constant 0 : index
    %c0_13 = arith.constant 0 : index
    %13 = vector.load %arg6[%c0_12, %c0_13] : memref<128x384xf32, #tpu.memory_space<vmem>>, vector<128x384xf32>
    %cst_14 = arith.constant dense<0.000000e+00> : vector<16x384xf32>
    %14 = tpu.matmul %12, %13, %cst_14 {dimension_numbers = #tpu.dot_dimension_numbers<[1], [0], [0], [1], [0, 0, 1, 1], [], []>} : vector<16x128xf32>, vector<128x384xf32>, vector<16x384xf32> -> vector<16x384xf32>
    %15 = math.tanh %14 : vector<16x384xf32>
    %c0_15 = arith.constant 0 : index
    %c0_16 = arith.constant 0 : index
    %16 = vector.load %arg7[%c0_15, %c0_16] : memref<384x256xf32, #tpu.memory_space<vmem>>, vector<384x256xf32>
    %cst_17 = arith.constant dense<0.000000e+00> : vector<16x256xf32>
    %17 = tpu.matmul %15, %16, %cst_17 {dimension_numbers = #tpu.dot_dimension_numbers<[1], [0], [0], [1], [0, 0, 1, 1], [], []>} : vector<16x384xf32>, vector<384x256xf32>, vector<16x256xf32> -> vector<16x256xf32>
    %c0_18 = arith.constant 0 : index
    %c0_19 = arith.constant 0 : index
    %18 = vector.load %arg8[%c0_18, %c0_19] : memref<16x256xf32, #tpu.memory_space<vmem>>, vector<16x256xf32>
    tpu.vector_store %arg8[%c0_18, %c0_19], %17 {strides = array<i32>} : memref<16x256xf32, #tpu.memory_space<vmem>>, vector<16x256xf32>,
    return
  }
  func.func @transform_0(%arg0: i32) -> (i32, i32) {
    %c0_i32 = arith.constant 0 : i32
    %c0_i32_0 = arith.constant 0 : i32
    return %arg0, %c0_i32 : i32, i32
  }
  func.func @transform_1(%arg0: i32) -> (i32, i32) {
    %c0_i32 = arith.constant 0 : i32
    %c0_i32_0 = arith.constant 0 : i32
    %c0_i32_1 = arith.constant 0 : i32
    return %c0_i32, %c0_i32_0 : i32, i32
  }
  func.func @transform_2(%arg0: i32) -> (i32, i32) {
    %c0_i32 = arith.constant 0 : i32
    %c0_i32_0 = arith.constant 0 : i32
    %c0_i32_1 = arith.constant 0 : i32
    return %c0_i32, %c0_i32_0 : i32, i32
  }
  func.func @transform_3(%arg0: i32) -> (i32, i32) {
    %c0_i32 = arith.constant 0 : i32
    %c0_i32_0 = arith.constant 0 : i32
    %c0_i32_1 = arith.constant 0 : i32
    return %c0_i32, %c0_i32_0 : i32, i32
  }
  func.func @transform_4(%arg0: i32) -> (i32, i32) {
    %c0_i32 = arith.constant 0 : i32
    %c0_i32_0 = arith.constant 0 : i32
    %c0_i32_1 = arith.constant 0 : i32
    return %c0_i32, %c0_i32_0 : i32, i32
  }
  func.func @transform_5(%arg0: i32) -> (i32, i32) {
    %c0_i32 = arith.constant 0 : i32
    %c0_i32_0 = arith.constant 0 : i32
    %c0_i32_1 = arith.constant 0 : i32
    return %c0_i32, %c0_i32_0 : i32, i32
  }
  func.func @transform_6(%arg0: i32) -> (i32, i32) {
    %c0_i32 = arith.constant 0 : i32
    %c0_i32_0 = arith.constant 0 : i32
    %c0_i32_1 = arith.constant 0 : i32
    return %c0_i32, %c0_i32_0 : i32, i32
  }
  func.func @transform_7(%arg0: i32) -> (i32, i32) {
    %c0_i32 = arith.constant 0 : i32
    %c0_i32_0 = arith.constant 0 : i32
    return %arg0, %c0_i32 : i32, i32
  }
}

</mosaic_0001>

<llo_original>
// kernel: tpu_custom_call.1
$region0: #{tpu_custom_call.1}
  #allocation0 [shape = 'u32[]', space=smem, size = 0x4, offset = 0x4, fixed_abs, tag = 'smem constant byte address 0x4 - core index']
  #allocation1 [shape = 'u32[144,128]{1,0:T(1,128)}', space=vmem, size = 0x12000, scoped, tag = 'internal scratch']
  %s0 = inlined_call_operand.hbm [shape: f32[40,256], index: 0, kind: input, shape index: {}]
  %s1 = inlined_call_operand.hbm [shape: f32[256,384], index: 1, kind: input, shape index: {}]
  %s2 = inlined_call_operand.hbm [shape: f32[384,128], index: 2, kind: input, shape index: {}]
  %s3 = inlined_call_operand.hbm [shape: f32[128,128], index: 3, kind: input, shape index: {}]
  %s4 = inlined_call_operand.hbm [shape: f32[128,128], index: 4, kind: input, shape index: {}]
  %s5 = inlined_call_operand.hbm [shape: f32[128,384], index: 5, kind: input, shape index: {}]
  %s6 = inlined_call_operand.hbm [shape: f32[384,256], index: 6, kind: input, shape index: {}]
  %s7 = inlined_call_operand.hbm [shape: f32[40,256], index: 7, kind: output, shape index: {}]
  %s8 = sld [smem:[#allocation0]]
  $region89: #{tpu_custom_call.1} parent=0
    _
  %s10 = ssub.s32 1, %s8
  %s11 = scalar_select 0, %s10, %s8
  $region1: #{tpu_custom_call.1} parent=0
    #allocation2 [shape = 'u8[32768]{0}', space=vmem, size = 0x8000, scoped, tag = 'input window, operand 0']
    #allocation3 [shape = 's32[2]{0}', space=sflag, size = 0x8, scoped, tag = 'scoped memory for tpu_custom_call.1']
    #allocation4 [shape = 's32[2]{0}', space=sflag, size = 0x8, scoped, tag = 'scoped memory for tpu_custom_call.1']
    #allocation5 [shape = 'u8[393216]{0}', space=vmem, size = 0x60000, scoped, tag = 'input window, operand 1, single buffered']
    #allocation6 [shape = 's32[1]{0}', space=sflag, size = 0x4, scoped, tag = 'scoped memory for tpu_custom_call.1']
    #allocation7 [shape = 'u8[196608]{0}', space=vmem, size = 0x30000, scoped, tag = 'input window, operand 2, single buffered']
    #allocation8 [shape = 'u8[65536]{0}', space=vmem, size = 0x10000, scoped, tag = 'input window, operand 3, single buffered']
    #allocation9 [shape = 's32[1]{0}', space=sflag, size = 0x4, scoped, tag = 'scoped memory for tpu_custom_call.1']
    #allocation10 [shape = 'u8[65536]{0}', space=vmem, size = 0x10000, scoped, tag = 'input window, operand 4, single buffered']
    #allocation11 [shape = 'u8[196608]{0}', space=vmem, size = 0x30000, scoped, tag = 'input window, operand 5, single buffered']
    #allocation12 [shape = 's32[1]{0}', space=sflag, size = 0x4, scoped, tag = 'scoped memory for tpu_custom_call.1']
    #allocation13 [shape = 'u8[393216]{0}', space=vmem, size = 0x60000, scoped, tag = 'input window, operand 6, single buffered']
    #allocation14 [shape = 'u8[32768]{0}', space=vmem, size = 0x8000, scoped, tag = 'output window, operand 0']
    %12 = vsyncpa [#allocation3], 0
    %s13 = scalar_lea.sflag [#allocation3], 1
    %14 = vsyncpa %s13, 0
    %15 = vsyncpa [#allocation6], 0
    %16 = vsyncpa [#allocation9], 0
    %17 = vsyncpa [#allocation12], 0
    %18 = vsyncpa [#allocation4], 0
    %s19 = scalar_lea.sflag [#allocation4], 1
    %20 = vsyncpa %s19, 0
    loop: start=0, step=1, limit=5
    $region2: #{tpu_custom_call.1} parent=1 // loop_pre_header
      _
    $region3: #{tpu_custom_call.1} parent=1 // loop_header
      %s22 = sphi 0, %s26
      %p23 = scmp.ge.s32.totalorder %s22, 5
      %s32 = sphi 0, %s34
      %s35 = sphi 0, %s32
      %s36 = sphi 0, %s35
      %s52 = sphi 0, %s36
      %s56 = sphi 0, %s56
      %s58 = sphi 0, %s56
      %s59 = sphi 0, %s58
      %s73 = sphi 0, %s59
      %s77 = sphi 0, %s77
      %s79 = sphi 0, %s77
      %s80 = sphi 0, %s79
      %s94 = sphi 0, %s80
      %s98 = sphi 0, %s98
      %s100 = sphi 0, %s98
      %s101 = sphi 0, %s100
      %s115 = sphi 0, %s101
      %s119 = sphi 0, %s119
      %s121 = sphi 0, %s119
      %s122 = sphi 0, %s121
      %s136 = sphi 0, %s122
      %s140 = sphi 0, %s140
      %s142 = sphi 0, %s140
      %s143 = sphi 0, %s142
      %s157 = sphi 0, %s143
      %s161 = sphi 0, %s161
      %s163 = sphi 0, %s161
      %s164 = sphi 0, %s163
      %s178 = sphi 0, %s164
      %s184 = sphi 0, %s186
      %s187 = sphi 0, %s184
      %s188 = sphi 0, %s187
      %s204 = sphi 0, %s188
    $region4: #{tpu_custom_call.1} parent=1 // loop_header_branch
      %25 = sbr.rel (%p23) target = $region8
    $region5: #{tpu_custom_call.1} parent=1 // loop_body
      %s27 = ssub.s32 %s22, 1
      %s28 = ssub.s32 %s22, 2
      %s29 = sadd.s32 %s22, 1
      %s30 = ssub.s32 %s22, %s29
      %p31 = scmp.eq.s32.totalorder %s30, 0
      %s33 = sadd.s32 %s32, 1
      %s34 = scalar_select %p31, %s32, %s33
      %p37 = pneg %p31
      %p38 = scmp.eq.s32.totalorder %s22, 2
      %p39 = por %p37, %p38
      %p40 = scmp.ne.s32.totalorder %s32, %s35
      %p41 = scmp.eq.s32.totalorder %s22, 0
      %p42 = por %p40, %p41
      %p43 = scmp.ne.s32.totalorder %s32, %s35
      %p44 = scmp.eq.s32.totalorder %s27, 2
      %p45 = por %p43, %p44
      %p46 = scmp.ne.s32.totalorder %s35, %s36
      %p47 = scmp.eq.s32.totalorder %s27, 0
      %p48 = por %p46, %p47
      %p49 = scmp.ne.s32.totalorder %s35, %s36
      %p50 = scmp.eq.s32.totalorder %s28, 2
      %p51 = por %p49, %p50
      %p53 = scmp.ne.s32.totalorder %s36, %s52
      %p54 = scmp.eq.s32.totalorder %s28, 0
      %p55 = por %p53, %p54
      %s57 = sadd.s32 %s56, 1
      %p60 = scmp.eq.s32.totalorder %s22, 2
      %p61 = scmp.ne.s32.totalorder %s56, %s58
      %p62 = scmp.eq.s32.totalorder %s22, 0
      %p63 = por %p61, %p62
      %p64 = scmp.ne.s32.totalorder %s56, %s58
      %p65 = scmp.eq.s32.totalorder %s27, 2
      %p66 = por %p64, %p65
      %p67 = scmp.ne.s32.totalorder %s58, %s59
      %p68 = scmp.eq.s32.totalorder %s27, 0
      %p69 = por %p67, %p68
      %p70 = scmp.ne.s32.totalorder %s58, %s59
      %p71 = scmp.eq.s32.totalorder %s28, 2
      %p72 = por %p70, %p71
      %p74 = scmp.ne.s32.totalorder %s59, %s73
      %p75 = scmp.eq.s32.totalorder %s28, 0
      %p76 = por %p74, %p75
      %s78 = sadd.s32 %s77, 1
      %p81 = scmp.eq.s32.totalorder %s22, 2
      %p82 = scmp.ne.s32.totalorder %s77, %s79
      %p83 = scmp.eq.s32.totalorder %s22, 0
      %p84 = por %p82, %p83
      %p85 = scmp.ne.s32.totalorder %s77, %s79
      %p86 = scmp.eq.s32.totalorder %s27, 2
      %p87 = por %p85, %p86
      %p88 = scmp.ne.s32.totalorder %s79, %s80
      %p89 = scmp.eq.s32.totalorder %s27, 0
      %p90 = por %p88, %p89
      %p91 = scmp.ne.s32.totalorder %s79, %s80
      %p92 = scmp.eq.s32.totalorder %s28, 2
      %p93 = por %p91, %p92
      %p95 = scmp.ne.s32.totalorder %s80, %s94
      %p96 = scmp.eq.s32.totalorder %s28, 0
      %p97 = por %p95, %p96
      %s99 = sadd.s32 %s98, 1
      %p102 = scmp.eq.s32.totalorder %s22, 2
      %p103 = scmp.ne.s32.totalorder %s98, %s100
      %p104 = scmp.eq.s32.totalorder %s22, 0
      %p105 = por %p103, %p104
      %p106 = scmp.ne.s32.totalorder %s98, %s100
      %p107 = scmp.eq.s32.totalorder %s27, 2
      %p108 = por %p106, %p107
      %p109 = scmp.ne.s32.totalorder %s100, %s101
      %p110 = scmp.eq.s32.totalorder %s27, 0
      %p111 = por %p109, %p110
      %p112 = scmp.ne.s32.totalorder %s100, %s101
      %p113 = scmp.eq.s32.totalorder %s28, 2
      %p114 = por %p112, %p113
      %p116 = scmp.ne.s32.totalorder %s101, %s115
      %p117 = scmp.eq.s32.totalorder %s28, 0
      %p118 = por %p116, %p117
      %s120 = sadd.s32 %s119, 1
      %p123 = scmp.eq.s32.totalorder %s22, 2
      %p124 = scmp.ne.s32.totalorder %s119, %s121
      %p125 = scmp.eq.s32.totalorder %s22, 0
      %p126 = por %p124, %p125
      %p127 = scmp.ne.s32.totalorder %s119, %s121
      %p128 = scmp.eq.s32.totalorder %s27, 2
      %p129 = por %p127, %p128
      %p130 = scmp.ne.s32.totalorder %s121, %s122
      %p131 = scmp.eq.s32.totalorder %s27, 0
      %p132 = por %p130, %p131
      %p133 = scmp.ne.s32.totalorder %s121, %s122
      %p134 = scmp.eq.s32.totalorder %s28, 2
      %p135 = por %p133, %p134
      %p137 = scmp.ne.s32.totalorder %s122, %s136
      %p138 = scmp.eq.s32.totalorder %s28, 0
      %p139 = por %p137, %p138
      %s141 = sadd.s32 %s140, 1
      %p144 = scmp.eq.s32.totalorder %s22, 2
      %p145 = scmp.ne.s32.totalorder %s140, %s142
      %p146 = scmp.eq.s32.totalorder %s22, 0
      %p147 = por %p145, %p146
      %p148 = scmp.ne.s32.totalorder %s140, %s142
      %p149 = scmp.eq.s32.totalorder %s27, 2
      %p150 = por %p148, %p149
      %p151 = scmp.ne.s32.totalorder %s142, %s143
      %p152 = scmp.eq.s32.totalorder %s27, 0
      %p153 = por %p151, %p152
      %p154 = scmp.ne.s32.totalorder %s142, %s143
      %p155 = scmp.eq.s32.totalorder %s28, 2
      %p156 = por %p154, %p155
      %p158 = scmp.ne.s32.totalorder %s143, %s157
      %p159 = scmp.eq.s32.totalorder %s28, 0
      %p160 = por %p158, %p159
      %s162 = sadd.s32 %s161, 1
      %p165 = scmp.eq.s32.totalorder %s22, 2
      %p166 = scmp.ne.s32.totalorder %s161, %s163
      %p167 = scmp.eq.s32.totalorder %s22, 0
      %p168 = por %p166, %p167
      %p169 = scmp.ne.s32.totalorder %s161, %s163
      %p170 = scmp.eq.s32.totalorder %s27, 2
      %p171 = por %p169, %p170
      %p172 = scmp.ne.s32.totalorder %s163, %s164
      %p173 = scmp.eq.s32.totalorder %s27, 0
      %p174 = por %p172, %p173
      %p175 = scmp.ne.s32.totalorder %s163, %s164
      %p176 = scmp.eq.s32.totalorder %s28, 2
      %p177 = por %p175, %p176
      %p179 = scmp.ne.s32.totalorder %s164, %s178
      %p180 = scmp.eq.s32.totalorder %s28, 0
      %p181 = por %p179, %p180
      %s182 = ssub.s32 %s22, %s29
      %p183 = scmp.eq.s32.totalorder %s182, 0
      %s185 = sadd.s32 %s184, 1
      %s186 = scalar_select %p183, %s184, %s185
      %p189 = pneg %p183
      %p190 = scmp.eq.s32.totalorder %s22, 2
      %p191 = por %p189, %p190
      %p192 = scmp.ne.s32.totalorder %s184, %s187
      %p193 = scmp.eq.s32.totalorder %s22, 0
      %p194 = por %p192, %p193
      %p195 = scmp.ne.s32.totalorder %s184, %s187
      %p196 = scmp.eq.s32.totalorder %s27, 2
      %p197 = por %p195, %p196
      %p198 = scmp.ne.s32.totalorder %s187, %s188
      %p199 = scmp.eq.s32.totalorder %s27, 0
      %p200 = por %p198, %p199
      %p201 = scmp.ne.s32.totalorder %s187, %s188
      %p202 = scmp.eq.s32.totalorder %s28, 2
      %p203 = por %p201, %p202
      %p205 = scmp.ne.s32.totalorder %s188, %s204
      %p206 = scmp.eq.s32.totalorder %s28, 0
      %p207 = por %p205, %p206
      %p208 = scmp.le.s32.totalorder 1, %s22
      %p209 = scmp.lt.s32.totalorder %s22, 4
      %p210 = pnand %p208, %p209
      %p211 = pneg %p210
      // Predicated region
      $region9: #{tpu_custom_call.1} parent=5 // pred_check
        _
      $region10: #{tpu_custom_call.1} parent=5 // pred_check_branch
        %213 = sbr.rel (%p210) target = $region12
      $region11: #{tpu_custom_call.1} parent=5 // pred_region
        %s214 = ssub.s32 %s22, 1
        // Predicated region
        $region13: #{tpu_custom_call.1} parent=11 // pred_check
          %p215 = pneg %p69
        $region14: #{tpu_custom_call.1} parent=11 // pred_check_branch
          %217 = sbr.rel (%p215) target = $region16
        $region15: #{tpu_custom_call.1} parent=11 // pred_region
          %s219 = ssub.s32 12288, 12288
          %220 = vsyncadd [#allocation6], %s219
          %s221 = sshll.u32 [#allocation5], 4
          %s222 = int_to_ptr.vmem [resolvable:$true] %s221
          %227 = dma.hbm_to_vmem [thread:$0]  %s1, 12288, %s222, [#allocation6], 384, 384, 24
        $region16: #{tpu_custom_call.1} parent=11 // pred_fallthru
          _
        // Predicated region
        $region17: #{tpu_custom_call.1} parent=11 // pred_check
          %p228 = pneg %p90
        $region18: #{tpu_custom_call.1} parent=11 // pred_check_branch
          %230 = sbr.rel (%p228) target = $region20
        $region19: #{tpu_custom_call.1} parent=11 // pred_region
          %s232 = ssub.s32 6144, 6144
          %233 = vsyncadd [#allocation6], %s232
          %s234 = sshll.u32 [#allocation7], 4
          %s235 = int_to_ptr.vmem [resolvable:$true] %s234
          %240 = dma.hbm_to_vmem [thread:$0]  %s2, 6144, %s235, [#allocation6], 128, 128, 8
        $region20: #{tpu_custom_call.1} parent=11 // pred_fallthru
          _
        // Predicated region
        $region21: #{tpu_custom_call.1} parent=11 // pred_check
          %p241 = pneg %p111
        $region22: #{tpu_custom_call.1} parent=11 // pred_check_branch
          %243 = sbr.rel (%p241) target = $region24
        $region23: #{tpu_custom_call.1} parent=11 // pred_region
          %s245 = ssub.s32 2048, 2048
          %246 = vsyncadd [#allocation9], %s245
          %s247 = sshll.u32 [#allocation8], 4
          %s248 = int_to_ptr.vmem [resolvable:$true] %s247
          %253 = dma.hbm_to_vmem [thread:$0]  %s3, 2048, %s248, [#allocation9], 128, 128, 8
        $region24: #{tpu_custom_call.1} parent=11 // pred_fallthru
          _
        // Predicated region
        $region25: #{tpu_custom_call.1} parent=11 // pred_check
          %p254 = pneg %p132
        $region26: #{tpu_custom_call.1} parent=11 // pred_check_branch
          %256 = sbr.rel (%p254) target = $region28
        $region27: #{tpu_custom_call.1} parent=11 // pred_region
          %s258 = ssub.s32 2048, 2048
          %259 = vsyncadd [#allocation9], %s258
          %s260 = sshll.u32 [#allocation10], 4
          %s261 = int_to_ptr.vmem [resolvable:$true] %s260
          %266 = dma.hbm_to_vmem [thread:$0]  %s4, 2048, %s261, [#allocation9], 128, 128, 8
        $region28: #{tpu_custom_call.1} parent=11 // pred_fallthru
          _
        // Predicated region
        $region29: #{tpu_custom_call.1} parent=11 // pred_check
          %p267 = pneg %p153
        $region30: #{tpu_custom_call.1} parent=11 // pred_check_branch
          %269 = sbr.rel (%p267) target = $region32
        $region31: #{tpu_custom_call.1} parent=11 // pred_region
          %s271 = ssub.s32 6144, 6144
          %272 = vsyncadd [#allocation12], %s271
          %s273 = sshll.u32 [#allocation11], 4
          %s274 = int_to_ptr.vmem [resolvable:$true] %s273
          %279 = dma.hbm_to_vmem [thread:$0]  %s5, 6144, %s274, [#allocation12], 384, 384, 24
        $region32: #{tpu_custom_call.1} parent=11 // pred_fallthru
          _
        // Predicated region
        $region33: #{tpu_custom_call.1} parent=11 // pred_check
          %p280 = pneg %p174
        $region34: #{tpu_custom_call.1} parent=11 // pred_check_branch
          %282 = sbr.rel (%p280) target = $region36
        $region35: #{tpu_custom_call.1} parent=11 // pred_region
          %s284 = ssub.s32 12288, 12288
          %285 = vsyncadd [#allocation12], %s284
          %s286 = sshll.u32 [#allocation13], 4
          %s287 = int_to_ptr.vmem [resolvable:$true] %s286
          %292 = dma.hbm_to_vmem [thread:$0]  %s6, 12288, %s287, [#allocation12], 256, 256, 16
        $region36: #{tpu_custom_call.1} parent=11 // pred_fallthru
          _
      $region12: #{tpu_custom_call.1} parent=5 // pred_fallthru
        _
      %p293 = scmp.lt.s32.totalorder %s22, 3
      // Predicated region
      $region37: #{tpu_custom_call.1} parent=5 // pred_check
        %p294 = pneg %p293
      $region38: #{tpu_custom_call.1} parent=5 // pred_check_branch
        %296 = sbr.rel (%p294) target = $region40
      $region39: #{tpu_custom_call.1} parent=5 // pred_region
        // Predicated region
        $region41: #{tpu_custom_call.1} parent=39 // pred_check
          %p297 = pneg %p42
        $region42: #{tpu_custom_call.1} parent=39 // pred_check_branch
          %299 = sbr.rel (%p297) target = $region44
        $region43: #{tpu_custom_call.1} parent=39 // pred_region
          %s300 = sand.u32 %s32, 1
          %s301 = scalar_lea.sflag [#allocation3], %s300
          %s302 = sand.u32 %s32, 1
          %s303 = smul.addr %s302, 32
          %s304 = scalar_lea.vmem [#allocation2], %s303
          %s305 = smul.u32 2, %s22
          %s306 = ssub.s32 5, %s305
          %p307 = scmp.lt.s32.totalorder %s306, 2
          %s308 = scalar_select %p307, %s306, 2
          %s309 = smul.u32 128, %s308
          %s310 = smul.u32 %s309, 2
          %s312 = ssub.s32 512, %s310
          %313 = vsyncadd %s301, %s312
          %p314 = scmp.ne.s32.totalorder 0, %s310
          %s315 = smul.addr %s305, 2
          %s316 = smul.addr %s315, 128
          %s317 = scalar_lea.hbm %s0, %s316
          %s318 = smul.u32 16, %s308
          %s319 = sshll.u32 %s304, 4
          %s320 = int_to_ptr.vmem [resolvable:$true] %s319
          %s321 = sshll.u32 %s318, 4
          %325 = dma.hbm_to_vmem [thread:$0]  (%p314), %s317, %s321, %s320, %s301, 256, 256, 16
        $region44: #{tpu_custom_call.1} parent=39 // pred_fallthru
          _
      $region40: #{tpu_custom_call.1} parent=5 // pred_fallthru
        _
      %p326 = scmp.le.s32.totalorder 1, %s22
      %p327 = scmp.lt.s32.totalorder %s22, 4
      %p328 = pnand %p326, %p327
      %p329 = pneg %p328
      // Predicated region
      $region45: #{tpu_custom_call.1} parent=5 // pred_check
        _
      $region46: #{tpu_custom_call.1} parent=5 // pred_check_branch
        %331 = sbr.rel (%p328) target = $region48
      $region47: #{tpu_custom_call.1} parent=5 // pred_region
        %s332 = ssub.s32 %s22, 1
        %s333 = sand.u32 %s35, 1
        %s334 = scalar_lea.sflag [#allocation3], %s333
        %s335 = sand.u32 %s35, 1
        %s336 = smul.addr %s335, 32
        %s337 = scalar_lea.vmem [#allocation2], %s336
        // Predicated region
        $region49: #{tpu_custom_call.1} parent=47 // pred_check
          %p338 = pneg %p48
        $region50: #{tpu_custom_call.1} parent=47 // pred_check_branch
          %340 = sbr.rel (%p338) target = $region52
        $region51: #{tpu_custom_call.1} parent=47 // pred_region
          %341 = dma.done %s334, 512
        $region52: #{tpu_custom_call.1} parent=47 // pred_fallthru
          _
        // Predicated region
        $region53: #{tpu_custom_call.1} parent=47 // pred_check
          %p342 = pneg %p69
        $region54: #{tpu_custom_call.1} parent=47 // pred_check_branch
          %344 = sbr.rel (%p342) target = $region56
        $region55: #{tpu_custom_call.1} parent=47 // pred_region
          %345 = dma.done [#allocation6], 12288
        $region56: #{tpu_custom_call.1} parent=47 // pred_fallthru
          _
        // Predicated region
        $region57: #{tpu_custom_call.1} parent=47 // pred_check
          %p346 = pneg %p90
        $region58: #{tpu_custom_call.1} parent=47 // pred_check_branch
          %348 = sbr.rel (%p346) target = $region60
        $region59: #{tpu_custom_call.1} parent=47 // pred_region
          %349 = dma.done [#allocation6], 6144
        $region60: #{tpu_custom_call.1} parent=47 // pred_fallthru
          _
        // Predicated region
        $region61: #{tpu_custom_call.1} parent=47 // pred_check
          %p350 = pneg %p111
        $region62: #{tpu_custom_call.1} parent=47 // pred_check_branch
          %352 = sbr.rel (%p350) target = $region64
        $region63: #{tpu_custom_call.1} parent=47 // pred_region
          %353 = dma.done [#allocation9], 2048
        $region64: #{tpu_custom_call.1} parent=47 // pred_fallthru
          _
        // Predicated region
        $region65: #{tpu_custom_call.1} parent=47 // pred_check
          %p354 = pneg %p132
        $region66: #{tpu_custom_call.1} parent=47 // pred_check_branch
          %356 = sbr.rel (%p354) target = $region68
        $region67: #{tpu_custom_call.1} parent=47 // pred_region
          %357 = dma.done [#allocation9], 2048
        $region68: #{tpu_custom_call.1} parent=47 // pred_fallthru
          _
        // Predicated region
        $region69: #{tpu_custom_call.1} parent=47 // pred_check
          %p358 = pneg %p153
        $region70: #{tpu_custom_call.1} parent=47 // pred_check_branch
          %360 = sbr.rel (%p358) target = $region72
        $region71: #{tpu_custom_call.1} parent=47 // pred_region
          %361 = dma.done [#allocation12], 6144
        $region72: #{tpu_custom_call.1} parent=47 // pred_fallthru
          _
        // Predicated region
        $region73: #{tpu_custom_call.1} parent=47 // pred_check
          %p362 = pneg %p174
        $region74: #{tpu_custom_call.1} parent=47 // pred_check_branch
          %364 = sbr.rel (%p362) target = $region76
        $region75: #{tpu_custom_call.1} parent=47 // pred_region
          %365 = dma.done [#allocation12], 12288
        $region76: #{tpu_custom_call.1} parent=47 // pred_fallthru
          _
        %s366 = sand.u32 %s35, 1
        %s367 = scalar_lea.sflag [#allocation3], %s366
        %s368 = sand.u32 %s35, 1
        %s369 = smul.addr %s368, 32
        %s370 = scalar_lea.vmem [#allocation2], %s369
        %p371 = pneg %p48
        %p372 = pneg %p45
        %p373 = pneg %p69
        %p374 = pneg %p66
        %p375 = pneg %p90
        %p376 = pneg %p87
        %p377 = pneg %p111
        %p378 = pneg %p108
        %p379 = pneg %p132
        %p380 = pneg %p129
        %p381 = pneg %p153
        %p382 = pneg %p150
        %p383 = pneg %p174
        %p384 = pneg %p171
        %p385 = pneg %p200
        %p386 = pneg %p197
        %s387 = sand.u32 %s187, 1
        %s388 = scalar_lea.sflag [#allocation4], %s387
        %s389 = sand.u32 %s187, 1
        %s390 = smul.addr %s389, 32
        %s391 = scalar_lea.vmem [#allocation14], %s390
        %s392 = smul.u32 2, %s27
        %s393 = ssub.s32 5, %s392
        %p394 = scmp.lt.s32.totalorder %s393, 2
        %s395 = scalar_select %p394, %s393, 2
        %s396 = smul.u32 128, %s395
        %s397 = smul.u32 %s396, 2
        %s398 = smul.u32 2, %s27
        %s399 = ssub.s32 5, %s398
        %p400 = scmp.lt.s32.totalorder %s399, 2
        %s401 = scalar_select %p400, %s399, 2
        %s402 = smul.u32 128, %s401
        %s403 = smul.u32 %s402, 2
        %v404 = vld [vmem:[%s337] sm:$0xff]
        %v405 = vld [vmem:[%s337 + $0x8] sm:$0xff]
        %v406 = vld [vmem:[%s337 + $0x10] sm:$0xff]
        %v407 = vld [vmem:[%s337 + $0x18] sm:$0xff]
        %v408 = vld [vmem:[#allocation5] sm:$0xff]
        %v409 = vld [vmem:[#allocation5 + $0x8] sm:$0xff]
        %v410 = vld [vmem:[#allocation5 + $0x10] sm:$0xff]
        %v411 = vld [vmem:[#allocation5 + $0x18] sm:$0xff]
        %v412 = vld [vmem:[#allocation5 + $0x20] sm:$0xff]
        %v413 = vld [vmem:[#allocation5 + $0x28] sm:$0xff]
        %v414 = vld [vmem:[#allocation5 + $0x30] sm:$0xff]
        %v415 = vld [vmem:[#allocation5 + $0x38] sm:$0xff]
        %v416 = vld [vmem:[#allocation5 + $0x40] sm:$0xff]
        %v417 = vld [vmem:[#allocation5 + $0x48] sm:$0xff]
        %v418 = vld [vmem:[#allocation5 + $0x50] sm:$0xff]
        %v419 = vld [vmem:[#allocation5 + $0x58] sm:$0xff]
        %v420 = vld [vmem:[#allocation5 + $0x60] sm:$0xff]
        %v421 = vld [vmem:[#allocation5 + $0x68] sm:$0xff]
        %v422 = vld [vmem:[#allocation5 + $0x70] sm:$0xff]
        %v423 = vld [vmem:[#allocation5 + $0x78] sm:$0xff]
        %v424 = vld [vmem:[#allocation5 + $0x80] sm:$0xff]
        %v425 = vld [vmem:[#allocation5 + $0x88] sm:$0xff]
        %v426 = vld [vmem:[#allocation5 + $0x90] sm:$0xff]
        %v427 = vld [vmem:[#allocation5 + $0x98] sm:$0xff]
        %v428 = vld [vmem:[#allocation5 + $0xa0] sm:$0xff]
        %v429 = vld [vmem:[#allocation5 + $0xa8] sm:$0xff]
        %v430 = vld [vmem:[#allocation5 + $0xb0] sm:$0xff]
        %v431 = vld [vmem:[#allocation5 + $0xb8] sm:$0xff]
        %v432 = vld [vmem:[#allocation5 + $0xc0] sm:$0xff]
        %v433 = vld [vmem:[#allocation5 + $0xc8] sm:$0xff]
        %v434 = vld [vmem:[#allocation5 + $0xd0] sm:$0xff]
        %v435 = vld [vmem:[#allocation5 + $0xd8] sm:$0xff]
        %v436 = vld [vmem:[#allocation5 + $0xe0] sm:$0xff]
        %v437 = vld [vmem:[#allocation5 + $0xe8] sm:$0xff]
        %v438 = vld [vmem:[#allocation5 + $0xf0] sm:$0xff]
        %v439 = vld [vmem:[#allocation5 + $0xf8] sm:$0xff]
        %v440 = vld [vmem:[#allocation5 + $0x100] sm:$0xff]
        %v441 = vld [vmem:[#allocation5 + $0x108] sm:$0xff]
        %v442 = vld [vmem:[#allocation5 + $0x110] sm:$0xff]
        %v443 = vld [vmem:[#allocation5 + $0x118] sm:$0xff]
        %v444 = vld [vmem:[#allocation5 + $0x120] sm:$0xff]
        %v445 = vld [vmem:[#allocation5 + $0x128] sm:$0xff]
        %v446 = vld [vmem:[#allocation5 + $0x130] sm:$0xff]
        %v447 = vld [vmem:[#allocation5 + $0x138] sm:$0xff]
        %v448 = vld [vmem:[#allocation5 + $0x140] sm:$0xff]
        %v449 = vld [vmem:[#allocation5 + $0x148] sm:$0xff]
        %v450 = vld [vmem:[#allocation5 + $0x150] sm:$0xff]
        %v451 = vld [vmem:[#allocation5 + $0x158] sm:$0xff]
        %v452 = vld [vmem:[#allocation5 + $0x160] sm:$0xff]
        %v453 = vld [vmem:[#allocation5 + $0x168] sm:$0xff]
        %v454 = vld [vmem:[#allocation5 + $0x170] sm:$0xff]
        %v455 = vld [vmem:[#allocation5 + $0x178] sm:$0xff]
        %v456 = vld [vmem:[#allocation5 + $0x180] sm:$0xff]
        %v457 = vld [vmem:[#allocation5 + $0x188] sm:$0xff]
        %v458 = vld [vmem:[#allocation5 + $0x190] sm:$0xff]
        %v459 = vld [vmem:[#allocation5 + $0x198] sm:$0xff]
        %v460 = vld [vmem:[#allocation5 + $0x1a0] sm:$0xff]
        %v461 = vld [vmem:[#allocation5 + $0x1a8] sm:$0xff]
        %v462 = vld [vmem:[#allocation5 + $0x1b0] sm:$0xff]
        %v463 = vld [vmem:[#allocation5 + $0x1b8] sm:$0xff]
        %v464 = vld [vmem:[#allocation5 + $0x1c0] sm:$0xff]
        %v465 = vld [vmem:[#allocation5 + $0x1c8] sm:$0xff]
        %v466 = vld [vmem:[#allocation5 + $0x1d0] sm:$0xff]
        %v467 = vld [vmem:[#allocation5 + $0x1d8] sm:$0xff]
        %v468 = vld [vmem:[#allocation5 + $0x1e0] sm:$0xff]
        %v469 = vld [vmem:[#allocation5 + $0x1e8] sm:$0xff]
        %v470 = vld [vmem:[#allocation5 + $0x1f0] sm:$0xff]
        %v471 = vld [vmem:[#allocation5 + $0x1f8] sm:$0xff]
        %v472 = vld [vmem:[#allocation5 + $0x200] sm:$0xff]
        %v473 = vld [vmem:[#allocation5 + $0x208] sm:$0xff]
        %v474 = vld [vmem:[#allocation5 + $0x210] sm:$0xff]
        %v475 = vld [vmem:[#allocation5 + $0x218] sm:$0xff]
        %v476 = vld [vmem:[#allocation5 + $0x220] sm:$0xff]
        %v477 = vld [vmem:[#allocation5 + $0x228] sm:$0xff]
        %v478 = vld [vmem:[#allocation5 + $0x230] sm:$0xff]
        %v479 = vld [vmem:[#allocation5 + $0x238] sm:$0xff]
        %v480 = vld [vmem:[#allocation5 + $0x240] sm:$0xff]
        %v481 = vld [vmem:[#allocation5 + $0x248] sm:$0xff]
        %v482 = vld [vmem:[#allocation5 + $0x250] sm:$0xff]
        %v483 = vld [vmem:[#allocation5 + $0x258] sm:$0xff]
        %v484 = vld [vmem:[#allocation5 + $0x260] sm:$0xff]
        %v485 = vld [vmem:[#allocation5 + $0x268] sm:$0xff]
        %v486 = vld [vmem:[#allocation5 + $0x270] sm:$0xff]
        %v487 = vld [vmem:[#allocation5 + $0x278] sm:$0xff]
        %v488 = vld [vmem:[#allocation5 + $0x280] sm:$0xff]
        %v489 = vld [vmem:[#allocation5 + $0x288] sm:$0xff]
        %v490 = vld [vmem:[#allocation5 + $0x290] sm:$0xff]
        %v491 = vld [vmem:[#allocation5 + $0x298] sm:$0xff]
        %v492 = vld [vmem:[#allocation5 + $0x2a0] sm:$0xff]
        %v493 = vld [vmem:[#allocation5 + $0x2a8] sm:$0xff]
        %v494 = vld [vmem:[#allocation5 + $0x2b0] sm:$0xff]
        %v495 = vld [vmem:[#allocation5 + $0x2b8] sm:$0xff]
        %v496 = vld [vmem:[#allocation5 + $0x2c0] sm:$0xff]
        %v497 = vld [vmem:[#allocation5 + $0x2c8] sm:$0xff]
        %v498 = vld [vmem:[#allocation5 + $0x2d0] sm:$0xff]
        %v499 = vld [vmem:[#allocation5 + $0x2d8] sm:$0xff]
        %v500 = vld [vmem:[#allocation5 + $0x2e0] sm:$0xff]
        %v501 = vld [vmem:[#allocation5 + $0x2e8] sm:$0xff]
        %v502 = vld [vmem:[#allocation5 + $0x2f0] sm:$0xff]
        %v503 = vld [vmem:[#allocation5 + $0x2f8] sm:$0xff]
        %504 = vmatprep.subr.mxu0 %v409
        %505 = vmatpush1.msra.mxu0 %v408
        %506 = vmatprep.subr.mxu0 %v412
        %507 = vmatpush1.msra.mxu0 %v411
        %508 = vmatprep.subr.mxu0 %v415
        %509 = vmatpush1.msra.mxu0 %v414
        %510 = vmatprep.subr.mxu0 %v418
        %511 = vmatpush1.msra.mxu0 %v417
        %512 = vmatprep.subr.mxu0 %v421
        %513 = vmatpush1.msra.mxu0 %v420
        %514 = vmatprep.subr.mxu0 %v424
        %515 = vmatpush1.msra.mxu0 %v423
        %516 = vmatprep.subr.mxu0 %v427
        %517 = vmatpush1.msra.mxu0 %v426
        %518 = vmatprep.subr.mxu0 %v430
        %519 = vmatpush1.msra.mxu0 %v429
        %520 = vmatprep.subr.mxu0 %v433
        %521 = vmatpush1.msra.mxu0 %v432
        %522 = vmatprep.subr.mxu0 %v436
        %523 = vmatpush1.msra.mxu0 %v435
        %524 = vmatprep.subr.mxu0 %v439
        %525 = vmatpush1.msra.mxu0 %v438
        %526 = vmatprep.subr.mxu0 %v442
        %527 = vmatpush1.msra.mxu0 %v441
        %528 = vmatprep.subr.mxu0 %v445
        %529 = vmatpush1.msra.mxu0 %v444
        %530 = vmatprep.subr.mxu0 %v448
        %531 = vmatpush1.msra.mxu0 %v447
        %532 = vmatprep.subr.mxu0 %v451
        %533 = vmatpush1.msra.mxu0 %v450
        %534 = vmatprep.subr.mxu0 %v454
        %535 = vmatpush1.msra.mxu0 %v453
        %536 = vmatprep.subr.mxu0 %v457
        %537 = vmatpush1.msra.mxu0 %v456
        %538 = vmatprep.subr.mxu0 %v460
        %539 = vmatpush1.msra.mxu0 %v459
        %540 = vmatprep.subr.mxu0 %v463
        %541 = vmatpush1.msra.mxu0 %v462
        %542 = vmatprep.subr.mxu0 %v466
        %543 = vmatpush1.msra.mxu0 %v465
        %544 = vmatprep.subr.mxu0 %v469
        %545 = vmatpush1.msra.mxu0 %v468
        %546 = vmatprep.subr.mxu0 %v472
        %547 = vmatpush1.msra.mxu0 %v471
        %548 = vmatprep.subr.mxu0 %v475
        %549 = vmatpush1.msra.mxu0 %v474
        %550 = vmatprep.subr.mxu0 %v478
        %551 = vmatpush1.msra.mxu0 %v477
        %552 = vmatprep.subr.mxu0 %v481
        %553 = vmatpush1.msra.mxu0 %v480
        %554 = vmatprep.subr.mxu0 %v484
        %555 = vmatpush1.msra.mxu0 %v483
        %556 = vmatprep.subr.mxu0 %v487
        %557 = vmatpush1.msra.mxu0 %v486
        %558 = vmatprep.subr.mxu0 %v490
        %559 = vmatpush1.msra.mxu0 %v489
        %560 = vmatprep.subr.mxu0 %v493
        %561 = vmatpush1.msra.mxu0 %v492
        %562 = vmatprep.subr.mxu0 %v496
        %563 = vmatpush1.msra.mxu0 %v495
        %564 = vmatprep.subr.mxu0 %v499
        %565 = vmatpush1.msra.mxu0 %v498
        %566 = vmatprep.subr.mxu0 %v502
        %567 = vmatpush1.msra.mxu0 %v501
        %568 = vmatprep.mubr.f32.mxu0 %v405
        %569 = vmatmul.mubr.f32.gmra.mrb[0].mxu0 %v404
        %v570 = vpop.f32.mrb[0].mxu0
        %v571 = vadd.f32 0.0, %v570
        %v572 = vpop.f32.mrb[0].mxu0
        %v573 = vadd.f32 0.0, %v572
        %574 = vmatprep.mubr.f32.mxu0 %v407
        %575 = vmatmul.mubr.f32.gmra.mrb[0].mxu0 %v406
        %v576 = vpop.f32.mrb[0].mxu0
        %v577 = vadd.f32 0.0, %v576
        %v578 = vpop.f32.mrb[0].mxu0
        %v579 = vadd.f32 0.0, %v578
        %580 = vdwg.mxu0
        %581 = vmatprep.subr.mxu0 0.0
        %582 = vmatpush1.msra.mxu0 %v410
        %583 = vmatprep.subr.mxu0 0.0
        %584 = vmatpush1.msra.mxu0 %v413
        %585 = vmatprep.subr.mxu0 0.0
        %586 = vmatpush1.msra.mxu0 %v416
        %587 = vmatprep.subr.mxu0 0.0
        %588 = vmatpush1.msra.mxu0 %v419
        %589 = vmatprep.subr.mxu0 0.0
        %590 = vmatpush1.msra.mxu0 %v422
        %591 = vmatprep.subr.mxu0 0.0
        %592 = vmatpush1.msra.mxu0 %v425
        %593 = vmatprep.subr.mxu0 0.0
        %594 = vmatpush1.msra.mxu0 %v428
        %595 = vmatprep.subr.mxu0 0.0
        %596 = vmatpush1.msra.mxu0 %v431
        %597 = vmatprep.subr.mxu0 0.0
        %598 = vmatpush1.msra.mxu0 %v434
        %599 = vmatprep.subr.mxu0 0.0
        %600 = vmatpush1.msra.mxu0 %v437
        %601 = vmatprep.subr.mxu0 0.0
        %602 = vmatpush1.msra.mxu0 %v440
        %603 = vmatprep.subr.mxu0 0.0
        %604 = vmatpush1.msra.mxu0 %v443
        %605 = vmatprep.subr.mxu0 0.0
        %606 = vmatpush1.msra.mxu0 %v446
        %607 = vmatprep.subr.mxu0 0.0
        %608 = vmatpush1.msra.mxu0 %v449
        %609 = vmatprep.subr.mxu0 0.0
        %610 = vmatpush1.msra.mxu0 %v452
        %611 = vmatprep.subr.mxu0 0.0
        %612 = vmatpush1.msra.mxu0 %v455
        %613 = vmatprep.subr.mxu0 0.0
        %614 = vmatpush1.msra.mxu0 %v458
        %615 = vmatprep.subr.mxu0 0.0
        %616 = vmatpush1.msra.mxu0 %v461
        %617 = vmatprep.subr.mxu0 0.0
        %618 = vmatpush1.msra.mxu0 %v464
        %619 = vmatprep.subr.mxu0 0.0
        %620 = vmatpush1.msra.mxu0 %v467
        %621 = vmatprep.subr.mxu0 0.0
        %622 = vmatpush1.msra.mxu0 %v470
        %623 = vmatprep.subr.mxu0 0.0
        %624 = vmatpush1.msra.mxu0 %v473
        %625 = vmatprep.subr.mxu0 0.0
        %626 = vmatpush1.msra.mxu0 %v476
        %627 = vmatprep.subr.mxu0 0.0
        %628 = vmatpush1.msra.mxu0 %v479
        %629 = vmatprep.subr.mxu0 0.0
        %630 = vmatpush1.msra.mxu0 %v482
        %631 = vmatprep.subr.mxu0 0.0
        %632 = vmatpush1.msra.mxu0 %v485
        %633 = vmatprep.subr.mxu0 0.0
        %634 = vmatpush1.msra.mxu0 %v488
        %635 = vmatprep.subr.mxu0 0.0
        %636 = vmatpush1.msra.mxu0 %v491
        %637 = vmatprep.subr.mxu0 0.0
        %638 = vmatpush1.msra.mxu0 %v494
        %639 = vmatprep.subr.mxu0 0.0
        %640 = vmatpush1.msra.mxu0 %v497
        %641 = vmatprep.subr.mxu0 0.0
        %642 = vmatpush1.msra.mxu0 %v500
        %643 = vmatprep.subr.mxu0 0.0
        %644 = vmatpush1.msra.mxu0 %v503
        %645 = vmatprep.mubr.f32.mxu0 %v405
        %646 = vmatmul.mubr.f32.gmra.mrb[0].mxu0 %v404
        %v647 = vpop.f32.mrb[0].mxu0
        %v648 = vadd.f32 0.0, %v647
        %v649 = vpop.f32.mrb[0].mxu0
        %650 = vmatprep.mubr.f32.mxu0 %v407
        %651 = vmatmul.mubr.f32.gmra.mrb[0].mxu0 %v406
        %v652 = vpop.f32.mrb[0].mxu0
        %v653 = vadd.f32 0.0, %v652
        %v654 = vpop.f32.mrb[0].mxu0
        %655 = vdwg.mxu0
        %v656 = vtanh.pop %v571
        %v657 = vtanh.pop %v573
        %v658 = vtanh.pop %v648
        %v659 = vtanh.pop %v577
        %v660 = vtanh.pop %v579
        %v661 = vtanh.pop %v653
        %v662 = vld [vmem:[#allocation7] sm:$0xff]
        %v663 = vld [vmem:[#allocation7 + $0x8] sm:$0xff]
        %v664 = vld [vmem:[#allocation7 + $0x10] sm:$0xff]
        %v665 = vld [vmem:[#allocation7 + $0x18] sm:$0xff]
        %v666 = vld [vmem:[#allocation7 + $0x20] sm:$0xff]
        %v667 = vld [vmem:[#allocation7 + $0x28] sm:$0xff]
        %v668 = vld [vmem:[#allocation7 + $0x30] sm:$0xff]
        %v669 = vld [vmem:[#allocation7 + $0x38] sm:$0xff]
        %v670 = vld [vmem:[#allocation7 + $0x40] sm:$0xff]
        %v671 = vld [vmem:[#allocation7 + $0x48] sm:$0xff]
        %v672 = vld [vmem:[#allocation7 + $0x50] sm:$0xff]
        %v673 = vld [vmem:[#allocation7 + $0x58] sm:$0xff]
        %v674 = vld [vmem:[#allocation7 + $0x60] sm:$0xff]
        %v675 = vld [vmem:[#allocation7 + $0x68] sm:$0xff]
        %v676 = vld [vmem:[#allocation7 + $0x70] sm:$0xff]
        %v677 = vld [vmem:[#allocation7 + $0x78] sm:$0xff]
        %v678 = vld [vmem:[#allocation7 + $0x80] sm:$0xff]
        %v679 = vld [vmem:[#allocation7 + $0x88] sm:$0xff]
        %v680 = vld [vmem:[#allocation7 + $0x90] sm:$0xff]
        %v681 = vld [vmem:[#allocation7 + $0x98] sm:$0xff]
        %v682 = vld [vmem:[#allocation7 + $0xa0] sm:$0xff]
        %v683 = vld [vmem:[#allocation7 + $0xa8] sm:$0xff]
        %v684 = vld [vmem:[#allocation7 + $0xb0] sm:$0xff]
        %v685 = vld [vmem:[#allocation7 + $0xb8] sm:$0xff]
        %v686 = vld [vmem:[#allocation7 + $0xc0] sm:$0xff]
        %v687 = vld [vmem:[#allocation7 + $0xc8] sm:$0xff]
        %v688 = vld [vmem:[#allocation7 + $0xd0] sm:$0xff]
        %v689 = vld [vmem:[#allocation7 + $0xd8] sm:$0xff]
        %v690 = vld [vmem:[#allocation7 + $0xe0] sm:$0xff]
        %v691 = vld [vmem:[#allocation7 + $0xe8] sm:$0xff]
        %v692 = vld [vmem:[#allocation7 + $0xf0] sm:$0xff]
        %v693 = vld [vmem:[#allocation7 + $0xf8] sm:$0xff]
        %v694 = vld [vmem:[#allocation7 + $0x100] sm:$0xff]
        %v695 = vld [vmem:[#allocation7 + $0x108] sm:$0xff]
        %v696 = vld [vmem:[#allocation7 + $0x110] sm:$0xff]
        %v697 = vld [vmem:[#allocation7 + $0x118] sm:$0xff]
        %v698 = vld [vmem:[#allocation7 + $0x120] sm:$0xff]
        %v699 = vld [vmem:[#allocation7 + $0x128] sm:$0xff]
        %v700 = vld [vmem:[#allocation7 + $0x130] sm:$0xff]
        %v701 = vld [vmem:[#allocation7 + $0x138] sm:$0xff]
        %v702 = vld [vmem:[#allocation7 + $0x140] sm:$0xff]
        %v703 = vld [vmem:[#allocation7 + $0x148] sm:$0xff]
        %v704 = vld [vmem:[#allocation7 + $0x150] sm:$0xff]
        %v705 = vld [vmem:[#allocation7 + $0x158] sm:$0xff]
        %v706 = vld [vmem:[#allocation7 + $0x160] sm:$0xff]
        %v707 = vld [vmem:[#allocation7 + $0x168] sm:$0xff]
        %v708 = vld [vmem:[#allocation7 + $0x170] sm:$0xff]
        %v709 = vld [vmem:[#allocation7 + $0x178] sm:$0xff]
        %710 = vmatprep.subr.mxu0 0.0
        %711 = vmatpush1.msra.mxu0 %v662
        %712 = vmatprep.subr.mxu0 0.0
        %713 = vmatpush1.msra.mxu0 %v663
        %714 = vmatprep.subr.mxu0 0.0
        %715 = vmatpush1.msra.mxu0 %v664
        %716 = vmatprep.subr.mxu0 0.0
        %717 = vmatpush1.msra.mxu0 %v665
        %718 = vmatprep.subr.mxu0 0.0
        %719 = vmatpush1.msra.mxu0 %v666
        %720 = vmatprep.subr.mxu0 0.0
        %721 = vmatpush1.msra.mxu0 %v667
        %722 = vmatprep.subr.mxu0 0.0
        %723 = vmatpush1.msra.mxu0 %v668
        %724 = vmatprep.subr.mxu0 0.0
        %725 = vmatpush1.msra.mxu0 %v669
        %726 = vmatprep.subr.mxu0 0.0
        %727 = vmatpush1.msra.mxu0 %v670
        %728 = vmatprep.subr.mxu0 0.0
        %729 = vmatpush1.msra.mxu0 %v671
        %730 = vmatprep.subr.mxu0 0.0
        %731 = vmatpush1.msra.mxu0 %v672
        %732 = vmatprep.subr.mxu0 0.0
        %733 = vmatpush1.msra.mxu0 %v673
        %734 = vmatprep.subr.mxu0 0.0
        %735 = vmatpush1.msra.mxu0 %v674
        %736 = vmatprep.subr.mxu0 0.0
        %737 = vmatpush1.msra.mxu0 %v675
        %738 = vmatprep.subr.mxu0 0.0
        %739 = vmatpush1.msra.mxu0 %v676
        %740 = vmatprep.subr.mxu0 0.0
        %741 = vmatpush1.msra.mxu0 %v677
        %742 = vmatprep.subr.mxu0 0.0
        %743 = vmatpush1.msra.mxu0 %v678
        %744 = vmatprep.subr.mxu0 0.0
        %745 = vmatpush1.msra.mxu0 %v679
        %746 = vmatprep.subr.mxu0 0.0
        %747 = vmatpush1.msra.mxu0 %v680
        %748 = vmatprep.subr.mxu0 0.0
        %749 = vmatpush1.msra.mxu0 %v681
        %750 = vmatprep.subr.mxu0 0.0
        %751 = vmatpush1.msra.mxu0 %v682
        %752 = vmatprep.subr.mxu0 0.0
        %753 = vmatpush1.msra.mxu0 %v683
        %754 = vmatprep.subr.mxu0 0.0
        %755 = vmatpush1.msra.mxu0 %v684
        %756 = vmatprep.subr.mxu0 0.0
        %757 = vmatpush1.msra.mxu0 %v685
        %758 = vmatprep.subr.mxu0 0.0
        %759 = vmatpush1.msra.mxu0 %v686
        %760 = vmatprep.subr.mxu0 0.0
        %761 = vmatpush1.msra.mxu0 %v687
        %762 = vmatprep.subr.mxu0 0.0
        %763 = vmatpush1.msra.mxu0 %v688
        %764 = vmatprep.subr.mxu0 0.0
        %765 = vmatpush1.msra.mxu0 %v689
        %766 = vmatprep.subr.mxu0 0.0
        %767 = vmatpush1.msra.mxu0 %v690
        %768 = vmatprep.subr.mxu0 0.0
        %769 = vmatpush1.msra.mxu0 %v691
        %770 = vmatprep.subr.mxu0 0.0
        %771 = vmatpush1.msra.mxu0 %v692
        %772 = vmatprep.subr.mxu0 0.0
        %773 = vmatpush1.msra.mxu0 %v693
        %774 = vmatprep.mubr.f32.mxu0 %v657
        %775 = vmatmul.mubr.f32.gmra.mrb[0].mxu0 %v656
        %v776 = vpop.f32.mrb[0].mxu0
        %v777 = vadd.f32 0.0, %v776
        %v778 = vpop.f32.mrb[0].mxu0
        %779 = vmatprep.mubr.f32.mxu0 %v660
        %780 = vmatmul.mubr.f32.gmra.mrb[0].mxu0 %v659
        %v781 = vpop.f32.mrb[0].mxu0
        %v782 = vadd.f32 0.0, %v781
        %v783 = vpop.f32.mrb[0].mxu0
        %784 = vdwg.mxu0
        %785 = vmatprep.subr.mxu0 0.0
        %786 = vmatpush1.msra.mxu0 %v694
        %787 = vmatprep.subr.mxu0 0.0
        %788 = vmatpush1.msra.mxu0 %v695
        %789 = vmatprep.subr.mxu0 0.0
        %790 = vmatpush1.msra.mxu0 %v696
        %791 = vmatprep.subr.mxu0 0.0
        %792 = vmatpush1.msra.mxu0 %v697
        %793 = vmatprep.subr.mxu0 0.0
        %794 = vmatpush1.msra.mxu0 %v698
        %795 = vmatprep.subr.mxu0 0.0
        %796 = vmatpush1.msra.mxu0 %v699
        %797 = vmatprep.subr.mxu0 0.0
        %798 = vmatpush1.msra.mxu0 %v700
        %799 = vmatprep.subr.mxu0 0.0
        %800 = vmatpush1.msra.mxu0 %v701
        %801 = vmatprep.subr.mxu0 0.0
        %802 = vmatpush1.msra.mxu0 %v702
        %803 = vmatprep.subr.mxu0 0.0
        %804 = vmatpush1.msra.mxu0 %v703
        %805 = vmatprep.subr.mxu0 0.0
        %806 = vmatpush1.msra.mxu0 %v704
        %807 = vmatprep.subr.mxu0 0.0
        %808 = vmatpush1.msra.mxu0 %v705
        %809 = vmatprep.subr.mxu0 0.0
        %810 = vmatpush1.msra.mxu0 %v706
        %811 = vmatprep.subr.mxu0 0.0
        %812 = vmatpush1.msra.mxu0 %v707
        %813 = vmatprep.subr.mxu0 0.0
        %814 = vmatpush1.msra.mxu0 %v708
        %815 = vmatprep.subr.mxu0 0.0
        %816 = vmatpush1.msra.mxu0 %v709
        %817 = vmatprep.subr.mxu0 0.0
        %818 = vmatpush1.msra.mxu0 0.0
        %819 = vmatprep.subr.mxu0 0.0
        %820 = vmatpush1.msra.mxu0 0.0
        %821 = vmatprep.subr.mxu0 0.0
        %822 = vmatpush1.msra.mxu0 0.0
        %823 = vmatprep.subr.mxu0 0.0
        %824 = vmatpush1.msra.mxu0 0.0
        %825 = vmatprep.subr.mxu0 0.0
        %826 = vmatpush1.msra.mxu0 0.0
        %827 = vmatprep.subr.mxu0 0.0
        %828 = vmatpush1.msra.mxu0 0.0
        %829 = vmatprep.subr.mxu0 0.0
        %830 = vmatpush1.msra.mxu0 0.0
        %831 = vmatprep.subr.mxu0 0.0
        %832 = vmatpush1.msra.mxu0 0.0
        %833 = vmatprep.subr.mxu0 0.0
        %834 = vmatpush1.msra.mxu0 0.0
        %835 = vmatprep.subr.mxu0 0.0
        %836 = vmatpush1.msra.mxu0 0.0
        %837 = vmatprep.subr.mxu0 0.0
        %838 = vmatpush1.msra.mxu0 0.0
        %839 = vmatprep.subr.mxu0 0.0
        %840 = vmatpush1.msra.mxu0 0.0
        %841 = vmatprep.subr.mxu0 0.0
        %842 = vmatpush1.msra.mxu0 0.0
        %843 = vmatprep.subr.mxu0 0.0
        %844 = vmatpush1.msra.mxu0 0.0
        %845 = vmatprep.subr.mxu0 0.0
        %846 = vmatpush1.msra.mxu0 0.0
        %847 = vmatprep.subr.mxu0 0.0
        %848 = vmatpush1.msra.mxu0 0.0
        %849 = vmatprep.mubr.f32.mxu0 0.0
        %850 = vmatmul.mubr.f32.gmra.mrb[0].mxu0 %v658
        %v851 = vpop.f32.mrb[0].mxu0
        %v852 = vadd.f32 %v777, %v851
        %v853 = vpop.f32.mrb[0].mxu0
        %854 = vmatprep.mubr.f32.mxu0 0.0
        %855 = vmatmul.mubr.f32.gmra.mrb[0].mxu0 %v661
        %v856 = vpop.f32.mrb[0].mxu0
        %v857 = vadd.f32 %v782, %v856
        %v858 = vpop.f32.mrb[0].mxu0
        %859 = vdwg.mxu0
        %v860 = vtanh.pop %v852
        %v861 = vtanh.pop %v857
        %v862 = vld [vmem:[#allocation8] sm:$0xff]
        %v863 = vld [vmem:[#allocation8 + $0x8] sm:$0xff]
        %v864 = vld [vmem:[#allocation8 + $0x10] sm:$0xff]
        %v865 = vld [vmem:[#allocation8 + $0x18] sm:$0xff]
        %v866 = vld [vmem:[#allocation8 + $0x20] sm:$0xff]
        %v867 = vld [vmem:[#allocation8 + $0x28] sm:$0xff]
        %v868 = vld [vmem:[#allocation8 + $0x30] sm:$0xff]
        %v869 = vld [vmem:[#allocation8 + $0x38] sm:$0xff]
        %v870 = vld [vmem:[#allocation8 + $0x40] sm:$0xff]
        %v871 = vld [vmem:[#allocation8 + $0x48] sm:$0xff]
        %v872 = vld [vmem:[#allocation8 + $0x50] sm:$0xff]
        %v873 = vld [vmem:[#allocation8 + $0x58] sm:$0xff]
        %v874 = vld [vmem:[#allocation8 + $0x60] sm:$0xff]
        %v875 = vld [vmem:[#allocation8 + $0x68] sm:$0xff]
        %v876 = vld [vmem:[#allocation8 + $0x70] sm:$0xff]
        %v877 = vld [vmem:[#allocation8 + $0x78] sm:$0xff]
        %878 = vmatprep.subr.mxu0 0.0
        %879 = vmatpush1.msra.mxu0 %v862
        %880 = vmatprep.subr.mxu0 0.0
        %881 = vmatpush1.msra.mxu0 %v863
        %882 = vmatprep.subr.mxu0 0.0
        %883 = vmatpush1.msra.mxu0 %v864
        %884 = vmatprep.subr.mxu0 0.0
        %885 = vmatpush1.msra.mxu0 %v865
        %886 = vmatprep.subr.mxu0 0.0
        %887 = vmatpush1.msra.mxu0 %v866
        %888 = vmatprep.subr.mxu0 0.0
        %889 = vmatpush1.msra.mxu0 %v867
        %890 = vmatprep.subr.mxu0 0.0
        %891 = vmatpush1.msra.mxu0 %v868
        %892 = vmatprep.subr.mxu0 0.0
        %893 = vmatpush1.msra.mxu0 %v869
        %894 = vmatprep.subr.mxu0 0.0
        %895 = vmatpush1.msra.mxu0 %v870
        %896 = vmatprep.subr.mxu0 0.0
        %897 = vmatpush1.msra.mxu0 %v871
        %898 = vmatprep.subr.mxu0 0.0
        %899 = vmatpush1.msra.mxu0 %v872
        %900 = vmatprep.subr.mxu0 0.0
        %901 = vmatpush1.msra.mxu0 %v873
        %902 = vmatprep.subr.mxu0 0.0
        %903 = vmatpush1.msra.mxu0 %v874
        %904 = vmatprep.subr.mxu0 0.0
        %905 = vmatpush1.msra.mxu0 %v875
        %906 = vmatprep.subr.mxu0 0.0
        %907 = vmatpush1.msra.mxu0 %v876
        %908 = vmatprep.subr.mxu0 0.0
        %909 = vmatpush1.msra.mxu0 %v877
        %910 = vmatprep.subr.mxu0 0.0
        %911 = vmatpush1.msra.mxu0 0.0
        %912 = vmatprep.subr.mxu0 0.0
        %913 = vmatpush1.msra.mxu0 0.0
        %914 = vmatprep.subr.mxu0 0.0
        %915 = vmatpush1.msra.mxu0 0.0
        %916 = vmatprep.subr.mxu0 0.0
        %917 = vmatpush1.msra.mxu0 0.0
        %918 = vmatprep.subr.mxu0 0.0
        %919 = vmatpush1.msra.mxu0 0.0
        %920 = vmatprep.subr.mxu0 0.0
        %921 = vmatpush1.msra.mxu0 0.0
        %922 = vmatprep.subr.mxu0 0.0
        %923 = vmatpush1.msra.mxu0 0.0
        %924 = vmatprep.subr.mxu0 0.0
        %925 = vmatpush1.msra.mxu0 0.0
        %926 = vmatprep.subr.mxu0 0.0
        %927 = vmatpush1.msra.mxu0 0.0
        %928 = vmatprep.subr.mxu0 0.0
        %929 = vmatpush1.msra.mxu0 0.0
        %930 = vmatprep.subr.mxu0 0.0
        %931 = vmatpush1.msra.mxu0 0.0
        %932 = vmatprep.subr.mxu0 0.0
        %933 = vmatpush1.msra.mxu0 0.0
        %934 = vmatprep.subr.mxu0 0.0
        %935 = vmatpush1.msra.mxu0 0.0
        %936 = vmatprep.subr.mxu0 0.0
        %937 = vmatpush1.msra.mxu0 0.0
        %938 = vmatprep.subr.mxu0 0.0
        %939 = vmatpush1.msra.mxu0 0.0
        %940 = vmatprep.subr.mxu0 0.0
        %941 = vmatpush1.msra.mxu0 0.0
        %942 = vmatprep.mubr.f32.mxu0 0.0
        %943 = vmatmul.mubr.f32.gmra.mrb[0].mxu0 %v860
        %v944 = vpop.f32.mrb[0].mxu0
        %v945 = vadd.f32 0.0, %v944
        %v946 = vpop.f32.mrb[0].mxu0
        %947 = vmatprep.mubr.f32.mxu0 0.0
        %948 = vmatmul.mubr.f32.gmra.mrb[0].mxu0 %v861
        %v949 = vpop.f32.mrb[0].mxu0
        %v950 = vadd.f32 0.0, %v949
        %v951 = vpop.f32.mrb[0].mxu0
        %952 = vdwg.mxu0
        %v953 = vtanh.pop %v945
        %v954 = vtanh.pop %v950
        %v955 = vld [vmem:[#allocation10] sm:$0xff]
        %v956 = vld [vmem:[#allocation10 + $0x8] sm:$0xff]
        %v957 = vld [vmem:[#allocation10 + $0x10] sm:$0xff]
        %v958 = vld [vmem:[#allocation10 + $0x18] sm:$0xff]
        %v959 = vld [vmem:[#allocation10 + $0x20] sm:$0xff]
        %v960 = vld [vmem:[#allocation10 + $0x28] sm:$0xff]
        %v961 = vld [vmem:[#allocation10 + $0x30] sm:$0xff]
        %v962 = vld [vmem:[#allocation10 + $0x38] sm:$0xff]
        %v963 = vld [vmem:[#allocation10 + $0x40] sm:$0xff]
        %v964 = vld [vmem:[#allocation10 + $0x48] sm:$0xff]
        %v965 = vld [vmem:[#allocation10 + $0x50] sm:$0xff]
        %v966 = vld [vmem:[#allocation10 + $0x58] sm:$0xff]
        %v967 = vld [vmem:[#allocation10 + $0x60] sm:$0xff]
        %v968 = vld [vmem:[#allocation10 + $0x68] sm:$0xff]
        %v969 = vld [vmem:[#allocation10 + $0x70] sm:$0xff]
        %v970 = vld [vmem:[#allocation10 + $0x78] sm:$0xff]
        %971 = vmatprep.subr.mxu0 0.0
        %972 = vmatpush1.msra.mxu0 %v955
        %973 = vmatprep.subr.mxu0 0.0
        %974 = vmatpush1.msra.mxu0 %v956
        %975 = vmatprep.subr.mxu0 0.0
        %976 = vmatpush1.msra.mxu0 %v957
        %977 = vmatprep.subr.mxu0 0.0
        %978 = vmatpush1.msra.mxu0 %v958
        %979 = vmatprep.subr.mxu0 0.0
        %980 = vmatpush1.msra.mxu0 %v959
        %981 = vmatprep.subr.mxu0 0.0
        %982 = vmatpush1.msra.mxu0 %v960
        %983 = vmatprep.subr.mxu0 0.0
        %984 = vmatpush1.msra.mxu0 %v961
        %985 = vmatprep.subr.mxu0 0.0
        %986 = vmatpush1.msra.mxu0 %v962
        %987 = vmatprep.subr.mxu0 0.0
        %988 = vmatpush1.msra.mxu0 %v963
        %989 = vmatprep.subr.mxu0 0.0
        %990 = vmatpush1.msra.mxu0 %v964
        %991 = vmatprep.subr.mxu0 0.0
        %992 = vmatpush1.msra.mxu0 %v965
        %993 = vmatprep.subr.mxu0 0.0
        %994 = vmatpush1.msra.mxu0 %v966
        %995 = vmatprep.subr.mxu0 0.0
        %996 = vmatpush1.msra.mxu0 %v967
        %997 = vmatprep.subr.mxu0 0.0
        %998 = vmatpush1.msra.mxu0 %v968
        %999 = vmatprep.subr.mxu0 0.0
        %1000 = vmatpush1.msra.mxu0 %v969
        %1001 = vmatprep.subr.mxu0 0.0
        %1002 = vmatpush1.msra.mxu0 %v970
        %1003 = vmatprep.subr.mxu0 0.0
        %1004 = vmatpush1.msra.mxu0 0.0
        %1005 = vmatprep.subr.mxu0 0.0
        %1006 = vmatpush1.msra.mxu0 0.0
        %1007 = vmatprep.subr.mxu0 0.0
        %1008 = vmatpush1.msra.mxu0 0.0
        %1009 = vmatprep.subr.mxu0 0.0
        %1010 = vmatpush1.msra.mxu0 0.0
        %1011 = vmatprep.subr.mxu0 0.0
        %1012 = vmatpush1.msra.mxu0 0.0
        %1013 = vmatprep.subr.mxu0 0.0
        %1014 = vmatpush1.msra.mxu0 0.0
        %1015 = vmatprep.subr.mxu0 0.0
        %1016 = vmatpush1.msra.mxu0 0.0
        %1017 = vmatprep.subr.mxu0 0.0
        %1018 = vmatpush1.msra.mxu0 0.0
        %1019 = vmatprep.subr.mxu0 0.0
        %1020 = vmatpush1.msra.mxu0 0.0
        %1021 = vmatprep.subr.mxu0 0.0
        %1022 = vmatpush1.msra.mxu0 0.0
        %1023 = vmatprep.subr.mxu0 0.0
        %1024 = vmatpush1.msra.mxu0 0.0
        %1025 = vmatprep.subr.mxu0 0.0
        %1026 = vmatpush1.msra.mxu0 0.0
        %1027 = vmatprep.subr.mxu0 0.0
        %1028 = vmatpush1.msra.mxu0 0.0
        %1029 = vmatprep.subr.mxu0 0.0
        %1030 = vmatpush1.msra.mxu0 0.0
        %1031 = vmatprep.subr.mxu0 0.0
        %1032 = vmatpush1.msra.mxu0 0.0
        %1033 = vmatprep.subr.mxu0 0.0
        %1034 = vmatpush1.msra.mxu0 0.0
        %1035 = vmatprep.mubr.f32.mxu0 0.0
        %1036 = vmatmul.mubr.f32.gmra.mrb[0].mxu0 %v953
        %v1037 = vpop.f32.mrb[0].mxu0
        %v1038 = vadd.f32 0.0, %v1037
        %v1039 = vpop.f32.mrb[0].mxu0
        %1040 = vmatprep.mubr.f32.mxu0 0.0
        %1041 = vmatmul.mubr.f32.gmra.mrb[0].mxu0 %v954
        %v1042 = vpop.f32.mrb[0].mxu0
        %v1043 = vadd.f32 0.0, %v1042
        %v1044 = vpop.f32.mrb[0].mxu0
        %1045 = vdwg.mxu0
        %v1046 = vtanh.pop %v1038
        %v1047 = vtanh.pop %v1043
        %v1048 = vld [vmem:[#allocation11] sm:$0xff]
        %v1049 = vld [vmem:[#allocation11 + $0x8] sm:$0xff]
        %v1050 = vld [vmem:[#allocation11 + $0x10] sm:$0xff]
        %v1051 = vld [vmem:[#allocation11 + $0x18] sm:$0xff]
        %v1052 = vld [vmem:[#allocation11 + $0x20] sm:$0xff]
        %v1053 = vld [vmem:[#allocation11 + $0x28] sm:$0xff]
        %v1054 = vld [vmem:[#allocation11 + $0x30] sm:$0xff]
        %v1055 = vld [vmem:[#allocation11 + $0x38] sm:$0xff]
        %v1056 = vld [vmem:[#allocation11 + $0x40] sm:$0xff]
        %v1057 = vld [vmem:[#allocation11 + $0x48] sm:$0xff]
        %v1058 = vld [vmem:[#allocation11 + $0x50] sm:$0xff]
        %v1059 = vld [vmem:[#allocation11 + $0x58] sm:$0xff]
        %v1060 = vld [vmem:[#allocation11 + $0x60] sm:$0xff]
        %v1061 = vld [vmem:[#allocation11 + $0x68] sm:$0xff]
        %v1062 = vld [vmem:[#allocation11 + $0x70] sm:$0xff]
        %v1063 = vld [vmem:[#allocation11 + $0x78] sm:$0xff]
        %v1064 = vld [vmem:[#allocation11 + $0x80] sm:$0xff]
        %v1065 = vld [vmem:[#allocation11 + $0x88] sm:$0xff]
        %v1066 = vld [vmem:[#allocation11 + $0x90] sm:$0xff]
        %v1067 = vld [vmem:[#allocation11 + $0x98] sm:$0xff]
        %v1068 = vld [vmem:[#allocation11 + $0xa0] sm:$0xff]
        %v1069 = vld [vmem:[#allocation11 + $0xa8] sm:$0xff]
        %v1070 = vld [vmem:[#allocation11 + $0xb0] sm:$0xff]
        %v1071 = vld [vmem:[#allocation11 + $0xb8] sm:$0xff]
        %v1072 = vld [vmem:[#allocation11 + $0xc0] sm:$0xff]
        %v1073 = vld [vmem:[#allocation11 + $0xc8] sm:$0xff]
        %v1074 = vld [vmem:[#allocation11 + $0xd0] sm:$0xff]
        %v1075 = vld [vmem:[#allocation11 + $0xd8] sm:$0xff]
        %v1076 = vld [vmem:[#allocation11 + $0xe0] sm:$0xff]
        %v1077 = vld [vmem:[#allocation11 + $0xe8] sm:$0xff]
        %v1078 = vld [vmem:[#allocation11 + $0xf0] sm:$0xff]
        %v1079 = vld [vmem:[#allocation11 + $0xf8] sm:$0xff]
        %v1080 = vld [vmem:[#allocation11 + $0x100] sm:$0xff]
        %v1081 = vld [vmem:[#allocation11 + $0x108] sm:$0xff]
        %v1082 = vld [vmem:[#allocation11 + $0x110] sm:$0xff]
        %v1083 = vld [vmem:[#allocation11 + $0x118] sm:$0xff]
        %v1084 = vld [vmem:[#allocation11 + $0x120] sm:$0xff]
        %v1085 = vld [vmem:[#allocation11 + $0x128] sm:$0xff]
        %v1086 = vld [vmem:[#allocation11 + $0x130] sm:$0xff]
        %v1087 = vld [vmem:[#allocation11 + $0x138] sm:$0xff]
        %v1088 = vld [vmem:[#allocation11 + $0x140] sm:$0xff]
        %v1089 = vld [vmem:[#allocation11 + $0x148] sm:$0xff]
        %v1090 = vld [vmem:[#allocation11 + $0x150] sm:$0xff]
        %v1091 = vld [vmem:[#allocation11 + $0x158] sm:$0xff]
        %v1092 = vld [vmem:[#allocation11 + $0x160] sm:$0xff]
        %v1093 = vld [vmem:[#allocation11 + $0x168] sm:$0xff]
        %v1094 = vld [vmem:[#allocation11 + $0x170] sm:$0xff]
        %v1095 = vld [vmem:[#allocation11 + $0x178] sm:$0xff]
        %1096 = vmatprep.subr.mxu0 %v1049
        %1097 = vmatpush1.msra.mxu0 %v1048
        %1098 = vmatprep.subr.mxu0 %v1052
        %1099 = vmatpush1.msra.mxu0 %v1051
        %1100 = vmatprep.subr.mxu0 %v1055
        %1101 = vmatpush1.msra.mxu0 %v1054
        %1102 = vmatprep.subr.mxu0 %v1058
        %1103 = vmatpush1.msra.mxu0 %v1057
        %1104 = vmatprep.subr.mxu0 %v1061
        %1105 = vmatpush1.msra.mxu0 %v1060
        %1106 = vmatprep.subr.mxu0 %v1064
        %1107 = vmatpush1.msra.mxu0 %v1063
        %1108 = vmatprep.subr.mxu0 %v1067
        %1109 = vmatpush1.msra.mxu0 %v1066
        %1110 = vmatprep.subr.mxu0 %v1070
        %1111 = vmatpush1.msra.mxu0 %v1069
        %1112 = vmatprep.subr.mxu0 %v1073
        %1113 = vmatpush1.msra.mxu0 %v1072
        %1114 = vmatprep.subr.mxu0 %v1076
        %1115 = vmatpush1.msra.mxu0 %v1075
        %1116 = vmatprep.subr.mxu0 %v1079
        %1117 = vmatpush1.msra.mxu0 %v1078
        %1118 = vmatprep.subr.mxu0 %v1082
        %1119 = vmatpush1.msra.mxu0 %v1081
        %1120 = vmatprep.subr.mxu0 %v1085
        %1121 = vmatpush1.msra.mxu0 %v1084
        %1122 = vmatprep.subr.mxu0 %v1088
        %1123 = vmatpush1.msra.mxu0 %v1087
        %1124 = vmatprep.subr.mxu0 %v1091
        %1125 = vmatpush1.msra.mxu0 %v1090
        %1126 = vmatprep.subr.mxu0 %v1094
        %1127 = vmatpush1.msra.mxu0 %v1093
        %1128 = vmatprep.subr.mxu0 0.0
        %1129 = vmatpush1.msra.mxu0 0.0
        %1130 = vmatprep.subr.mxu0 0.0
        %1131 = vmatpush1.msra.mxu0 0.0
        %1132 = vmatprep.subr.mxu0 0.0
        %1133 = vmatpush1.msra.mxu0 0.0
        %1134 = vmatprep.subr.mxu0 0.0
        %1135 = vmatpush1.msra.mxu0 0.0
        %1136 = vmatprep.subr.mxu0 0.0
        %1137 = vmatpush1.msra.mxu0 0.0
        %1138 = vmatprep.subr.mxu0 0.0
        %1139 = vmatpush1.msra.mxu0 0.0
        %1140 = vmatprep.subr.mxu0 0.0
        %1141 = vmatpush1.msra.mxu0 0.0
        %1142 = vmatprep.subr.mxu0 0.0
        %1143 = vmatpush1.msra.mxu0 0.0
        %1144 = vmatprep.subr.mxu0 0.0
        %1145 = vmatpush1.msra.mxu0 0.0
        %1146 = vmatprep.subr.mxu0 0.0
        %1147 = vmatpush1.msra.mxu0 0.0
        %1148 = vmatprep.subr.mxu0 0.0
        %1149 = vmatpush1.msra.mxu0 0.0
        %1150 = vmatprep.subr.mxu0 0.0
        %1151 = vmatpush1.msra.mxu0 0.0
        %1152 = vmatprep.subr.mxu0 0.0
        %1153 = vmatpush1.msra.mxu0 0.0
        %1154 = vmatprep.subr.mxu0 0.0
        %1155 = vmatpush1.msra.mxu0 0.0
        %1156 = vmatprep.subr.mxu0 0.0
        %1157 = vmatpush1.msra.mxu0 0.0
        %1158 = vmatprep.subr.mxu0 0.0
        %1159 = vmatpush1.msra.mxu0 0.0
        %1160 = vmatprep.mubr.f32.mxu0 0.0
        %1161 = vmatmul.mubr.f32.gmra.mrb[0].mxu0 %v1046
        %v1162 = vpop.f32.mrb[0].mxu0
        %v1163 = vadd.f32 0.0, %v1162
        %v1164 = vpop.f32.mrb[0].mxu0
        %v1165 = vadd.f32 0.0, %v1164
        %1166 = vmatprep.mubr.f32.mxu0 0.0
        %1167 = vmatmul.mubr.f32.gmra.mrb[0].mxu0 %v1047
        %v1168 = vpop.f32.mrb[0].mxu0
        %v1169 = vadd.f32 0.0, %v1168
        %v1170 = vpop.f32.mrb[0].mxu0
        %v1171 = vadd.f32 0.0, %v1170
        %1172 = vdwg.mxu0
        %1173 = vmatprep.subr.mxu0 0.0
        %1174 = vmatpush1.msra.mxu0 %v1050
        %1175 = vmatprep.subr.mxu0 0.0
        %1176 = vmatpush1.msra.mxu0 %v1053
        %1177 = vmatprep.subr.mxu0 0.0
        %1178 = vmatpush1.msra.mxu0 %v1056
        %1179 = vmatprep.subr.mxu0 0.0
        %1180 = vmatpush1.msra.mxu0 %v1059
        %1181 = vmatprep.subr.mxu0 0.0
        %1182 = vmatpush1.msra.mxu0 %v1062
        %1183 = vmatprep.subr.mxu0 0.0
        %1184 = vmatpush1.msra.mxu0 %v1065
        %1185 = vmatprep.subr.mxu0 0.0
        %1186 = vmatpush1.msra.mxu0 %v1068
        %1187 = vmatprep.subr.mxu0 0.0
        %1188 = vmatpush1.msra.mxu0 %v1071
        %1189 = vmatprep.subr.mxu0 0.0
        %1190 = vmatpush1.msra.mxu0 %v1074
        %1191 = vmatprep.subr.mxu0 0.0
        %1192 = vmatpush1.msra.mxu0 %v1077
        %1193 = vmatprep.subr.mxu0 0.0
        %1194 = vmatpush1.msra.mxu0 %v1080
        %1195 = vmatprep.subr.mxu0 0.0
        %1196 = vmatpush1.msra.mxu0 %v1083
        %1197 = vmatprep.subr.mxu0 0.0
        %1198 = vmatpush1.msra.mxu0 %v1086
        %1199 = vmatprep.subr.mxu0 0.0
        %1200 = vmatpush1.msra.mxu0 %v1089
        %1201 = vmatprep.subr.mxu0 0.0
        %1202 = vmatpush1.msra.mxu0 %v1092
        %1203 = vmatprep.subr.mxu0 0.0
        %1204 = vmatpush1.msra.mxu0 %v1095
        %1205 = vmatprep.subr.mxu0 0.0
        %1206 = vmatpush1.msra.mxu0 0.0
        %1207 = vmatprep.subr.mxu0 0.0
        %1208 = vmatpush1.msra.mxu0 0.0
        %1209 = vmatprep.subr.mxu0 0.0
        %1210 = vmatpush1.msra.mxu0 0.0
        %1211 = vmatprep.subr.mxu0 0.0
        %1212 = vmatpush1.msra.mxu0 0.0
        %1213 = vmatprep.subr.mxu0 0.0
        %1214 = vmatpush1.msra.mxu0 0.0
        %1215 = vmatprep.subr.mxu0 0.0
        %1216 = vmatpush1.msra.mxu0 0.0
        %1217 = vmatprep.subr.mxu0 0.0
        %1218 = vmatpush1.msra.mxu0 0.0
        %1219 = vmatprep.subr.mxu0 0.0
        %1220 = vmatpush1.msra.mxu0 0.0
        %1221 = vmatprep.subr.mxu0 0.0
        %1222 = vmatpush1.msra.mxu0 0.0
        %1223 = vmatprep.subr.mxu0 0.0
        %1224 = vmatpush1.msra.mxu0 0.0
        %1225 = vmatprep.subr.mxu0 0.0
        %1226 = vmatpush1.msra.mxu0 0.0
        %1227 = vmatprep.subr.mxu0 0.0
        %1228 = vmatpush1.msra.mxu0 0.0
        %1229 = vmatprep.subr.mxu0 0.0
        %1230 = vmatpush1.msra.mxu0 0.0
        %1231 = vmatprep.subr.mxu0 0.0
        %1232 = vmatpush1.msra.mxu0 0.0
        %1233 = vmatprep.subr.mxu0 0.0
        %1234 = vmatpush1.msra.mxu0 0.0
        %1235 = vmatprep.subr.mxu0 0.0
        %1236 = vmatpush1.msra.mxu0 0.0
        %1237 = vmatprep.mubr.f32.mxu0 0.0
        %1238 = vmatmul.mubr.f32.gmra.mrb[0].mxu0 %v1046
        %v1239 = vpop.f32.mrb[0].mxu0
        %v1240 = vadd.f32 0.0, %v1239
        %v1241 = vpop.f32.mrb[0].mxu0
        %1242 = vmatprep.mubr.f32.mxu0 0.0
        %1243 = vmatmul.mubr.f32.gmra.mrb[0].mxu0 %v1047
        %v1244 = vpop.f32.mrb[0].mxu0
        %v1245 = vadd.f32 0.0, %v1244
        %v1246 = vpop.f32.mrb[0].mxu0
        %1247 = vdwg.mxu0
        %v1248 = vtanh.pop %v1163
        %v1249 = vtanh.pop %v1165
        %v1250 = vtanh.pop %v1240
        %v1251 = vtanh.pop %v1169
        %v1252 = vtanh.pop %v1171
        %v1253 = vtanh.pop %v1245
        %v1254 = vld [vmem:[#allocation13] sm:$0xff]
        %v1255 = vld [vmem:[#allocation13 + $0x8] sm:$0xff]
        %v1256 = vld [vmem:[#allocation13 + $0x10] sm:$0xff]
        %v1257 = vld [vmem:[#allocation13 + $0x18] sm:$0xff]
        %v1258 = vld [vmem:[#allocation13 + $0x20] sm:$0xff]
        %v1259 = vld [vmem:[#allocation13 + $0x28] sm:$0xff]
        %v1260 = vld [vmem:[#allocation13 + $0x30] sm:$0xff]
        %v1261 = vld [vmem:[#allocation13 + $0x38] sm:$0xff]
        %v1262 = vld [vmem:[#allocation13 + $0x40] sm:$0xff]
        %v1263 = vld [vmem:[#allocation13 + $0x48] sm:$0xff]
        %v1264 = vld [vmem:[#allocation13 + $0x50] sm:$0xff]
        %v1265 = vld [vmem:[#allocation13 + $0x58] sm:$0xff]
        %v1266 = vld [vmem:[#allocation13 + $0x60] sm:$0xff]
        %v1267 = vld [vmem:[#allocation13 + $0x68] sm:$0xff]
        %v1268 = vld [vmem:[#allocation13 + $0x70] sm:$0xff]
        %v1269 = vld [vmem:[#allocation13 + $0x78] sm:$0xff]
        %v1270 = vld [vmem:[#allocation13 + $0x80] sm:$0xff]
        %v1271 = vld [vmem:[#allocation13 + $0x88] sm:$0xff]
        %v1272 = vld [vmem:[#allocation13 + $0x90] sm:$0xff]
        %v1273 = vld [vmem:[#allocation13 + $0x98] sm:$0xff]
        %v1274 = vld [vmem:[#allocation13 + $0xa0] sm:$0xff]
        %v1275 = vld [vmem:[#allocation13 + $0xa8] sm:$0xff]
        %v1276 = vld [vmem:[#allocation13 + $0xb0] sm:$0xff]
        %v1277 = vld [vmem:[#allocation13 + $0xb8] sm:$0xff]
        %v1278 = vld [vmem:[#allocation13 + $0xc0] sm:$0xff]
        %v1279 = vld [vmem:[#allocation13 + $0xc8] sm:$0xff]
        %v1280 = vld [vmem:[#allocation13 + $0xd0] sm:$0xff]
        %v1281 = vld [vmem:[#allocation13 + $0xd8] sm:$0xff]
        %v1282 = vld [vmem:[#allocation13 + $0xe0] sm:$0xff]
        %v1283 = vld [vmem:[#allocation13 + $0xe8] sm:$0xff]
        %v1284 = vld [vmem:[#allocation13 + $0xf0] sm:$0xff]
        %v1285 = vld [vmem:[#allocation13 + $0xf8] sm:$0xff]
        %v1286 = vld [vmem:[#allocation13 + $0x100] sm:$0xff]
        %v1287 = vld [vmem:[#allocation13 + $0x108] sm:$0xff]
        %v1288 = vld [vmem:[#allocation13 + $0x110] sm:$0xff]
        %v1289 = vld [vmem:[#allocation13 + $0x118] sm:$0xff]
        %v1290 = vld [vmem:[#allocation13 + $0x120] sm:$0xff]
        %v1291 = vld [vmem:[#allocation13 + $0x128] sm:$0xff]
        %v1292 = vld [vmem:[#allocation13 + $0x130] sm:$0xff]
        %v1293 = vld [vmem:[#allocation13 + $0x138] sm:$0xff]
        %v1294 = vld [vmem:[#allocation13 + $0x140] sm:$0xff]
        %v1295 = vld [vmem:[#allocation13 + $0x148] sm:$0xff]
        %v1296 = vld [vmem:[#allocation13 + $0x150] sm:$0xff]
        %v1297 = vld [vmem:[#allocation13 + $0x158] sm:$0xff]
        %v1298 = vld [vmem:[#allocation13 + $0x160] sm:$0xff]
        %v1299 = vld [vmem:[#allocation13 + $0x168] sm:$0xff]
        %v1300 = vld [vmem:[#allocation13 + $0x170] sm:$0xff]
        %v1301 = vld [vmem:[#allocation13 + $0x178] sm:$0xff]
        %v1302 = vld [vmem:[#allocation13 + $0x180] sm:$0xff]
        %v1303 = vld [vmem:[#allocation13 + $0x188] sm:$0xff]
        %v1304 = vld [vmem:[#allocation13 + $0x190] sm:$0xff]
        %v1305 = vld [vmem:[#allocation13 + $0x198] sm:$0xff]
        %v1306 = vld [vmem:[#allocation13 + $0x1a0] sm:$0xff]
        %v1307 = vld [vmem:[#allocation13 + $0x1a8] sm:$0xff]
        %v1308 = vld [vmem:[#allocation13 + $0x1b0] sm:$0xff]
        %v1309 = vld [vmem:[#allocation13 + $0x1b8] sm:$0xff]
        %v1310 = vld [vmem:[#allocation13 + $0x1c0] sm:$0xff]
        %v1311 = vld [vmem:[#allocation13 + $0x1c8] sm:$0xff]
        %v1312 = vld [vmem:[#allocation13 + $0x1d0] sm:$0xff]
        %v1313 = vld [vmem:[#allocation13 + $0x1d8] sm:$0xff]
        %v1314 = vld [vmem:[#allocation13 + $0x1e0] sm:$0xff]
        %v1315 = vld [vmem:[#allocation13 + $0x1e8] sm:$0xff]
        %v1316 = vld [vmem:[#allocation13 + $0x1f0] sm:$0xff]
        %v1317 = vld [vmem:[#allocation13 + $0x1f8] sm:$0xff]
        %v1318 = vld [vmem:[#allocation13 + $0x200] sm:$0xff]
        %v1319 = vld [vmem:[#allocation13 + $0x208] sm:$0xff]
        %v1320 = vld [vmem:[#allocation13 + $0x210] sm:$0xff]
        %v1321 = vld [vmem:[#allocation13 + $0x218] sm:$0xff]
        %v1322 = vld [vmem:[#allocation13 + $0x220] sm:$0xff]
        %v1323 = vld [vmem:[#allocation13 + $0x228] sm:$0xff]
        %v1324 = vld [vmem:[#allocation13 + $0x230] sm:$0xff]
        %v1325 = vld [vmem:[#allocation13 + $0x238] sm:$0xff]
        %v1326 = vld [vmem:[#allocation13 + $0x240] sm:$0xff]
        %v1327 = vld [vmem:[#allocation13 + $0x248] sm:$0xff]
        %v1328 = vld [vmem:[#allocation13 + $0x250] sm:$0xff]
        %v1329 = vld [vmem:[#allocation13 + $0x258] sm:$0xff]
        %v1330 = vld [vmem:[#allocation13 + $0x260] sm:$0xff]
        %v1331 = vld [vmem:[#allocation13 + $0x268] sm:$0xff]
        %v1332 = vld [vmem:[#allocation13 + $0x270] sm:$0xff]
        %v1333 = vld [vmem:[#allocation13 + $0x278] sm:$0xff]
        %v1334 = vld [vmem:[#allocation13 + $0x280] sm:$0xff]
        %v1335 = vld [vmem:[#allocation13 + $0x288] sm:$0xff]
        %v1336 = vld [vmem:[#allocation13 + $0x290] sm:$0xff]
        %v1337 = vld [vmem:[#allocation13 + $0x298] sm:$0xff]
        %v1338 = vld [vmem:[#allocation13 + $0x2a0] sm:$0xff]
        %v1339 = vld [vmem:[#allocation13 + $0x2a8] sm:$0xff]
        %v1340 = vld [vmem:[#allocation13 + $0x2b0] sm:$0xff]
        %v1341 = vld [vmem:[#allocation13 + $0x2b8] sm:$0xff]
        %v1342 = vld [vmem:[#allocation13 + $0x2c0] sm:$0xff]
        %v1343 = vld [vmem:[#allocation13 + $0x2c8] sm:$0xff]
        %v1344 = vld [vmem:[#allocation13 + $0x2d0] sm:$0xff]
        %v1345 = vld [vmem:[#allocation13 + $0x2d8] sm:$0xff]
        %v1346 = vld [vmem:[#allocation13 + $0x2e0] sm:$0xff]
        %v1347 = vld [vmem:[#allocation13 + $0x2e8] sm:$0xff]
        %v1348 = vld [vmem:[#allocation13 + $0x2f0] sm:$0xff]
        %v1349 = vld [vmem:[#allocation13 + $0x2f8] sm:$0xff]
        %1350 = vmatprep.subr.mxu0 %v1255
        %1351 = vmatpush1.msra.mxu0 %v1254
        %1352 = vmatprep.subr.mxu0 %v1257
        %1353 = vmatpush1.msra.mxu0 %v1256
        %1354 = vmatprep.subr.mxu0 %v1259
        %1355 = vmatpush1.msra.mxu0 %v1258
        %1356 = vmatprep.subr.mxu0 %v1261
        %1357 = vmatpush1.msra.mxu0 %v1260
        %1358 = vmatprep.subr.mxu0 %v1263
        %1359 = vmatpush1.msra.mxu0 %v1262
        %1360 = vmatprep.subr.mxu0 %v1265
        %1361 = vmatpush1.msra.mxu0 %v1264
        %1362 = vmatprep.subr.mxu0 %v1267
        %1363 = vmatpush1.msra.mxu0 %v1266
        %1364 = vmatprep.subr.mxu0 %v1269
        %1365 = vmatpush1.msra.mxu0 %v1268
        %1366 = vmatprep.subr.mxu0 %v1271
        %1367 = vmatpush1.msra.mxu0 %v1270
        %1368 = vmatprep.subr.mxu0 %v1273
        %1369 = vmatpush1.msra.mxu0 %v1272
        %1370 = vmatprep.subr.mxu0 %v1275
        %1371 = vmatpush1.msra.mxu0 %v1274
        %1372 = vmatprep.subr.mxu0 %v1277
        %1373 = vmatpush1.msra.mxu0 %v1276
        %1374 = vmatprep.subr.mxu0 %v1279
        %1375 = vmatpush1.msra.mxu0 %v1278
        %1376 = vmatprep.subr.mxu0 %v1281
        %1377 = vmatpush1.msra.mxu0 %v1280
        %1378 = vmatprep.subr.mxu0 %v1283
        %1379 = vmatpush1.msra.mxu0 %v1282
        %1380 = vmatprep.subr.mxu0 %v1285
        %1381 = vmatpush1.msra.mxu0 %v1284
        %1382 = vmatprep.subr.mxu0 %v1287
        %1383 = vmatpush1.msra.mxu0 %v1286
        %1384 = vmatprep.subr.mxu0 %v1289
        %1385 = vmatpush1.msra.mxu0 %v1288
        %1386 = vmatprep.subr.mxu0 %v1291
        %1387 = vmatpush1.msra.mxu0 %v1290
        %1388 = vmatprep.subr.mxu0 %v1293
        %1389 = vmatpush1.msra.mxu0 %v1292
        %1390 = vmatprep.subr.mxu0 %v1295
        %1391 = vmatpush1.msra.mxu0 %v1294
        %1392 = vmatprep.subr.mxu0 %v1297
        %1393 = vmatpush1.msra.mxu0 %v1296
        %1394 = vmatprep.subr.mxu0 %v1299
        %1395 = vmatpush1.msra.mxu0 %v1298
        %1396 = vmatprep.subr.mxu0 %v1301
        %1397 = vmatpush1.msra.mxu0 %v1300
        %1398 = vmatprep.subr.mxu0 %v1303
        %1399 = vmatpush1.msra.mxu0 %v1302
        %1400 = vmatprep.subr.mxu0 %v1305
        %1401 = vmatpush1.msra.mxu0 %v1304
        %1402 = vmatprep.subr.mxu0 %v1307
        %1403 = vmatpush1.msra.mxu0 %v1306
        %1404 = vmatprep.subr.mxu0 %v1309
        %1405 = vmatpush1.msra.mxu0 %v1308
        %1406 = vmatprep.subr.mxu0 %v1311
        %1407 = vmatpush1.msra.mxu0 %v1310
        %1408 = vmatprep.subr.mxu0 %v1313
        %1409 = vmatpush1.msra.mxu0 %v1312
        %1410 = vmatprep.subr.mxu0 %v1315
        %1411 = vmatpush1.msra.mxu0 %v1314
        %1412 = vmatprep.subr.mxu0 %v1317
        %1413 = vmatpush1.msra.mxu0 %v1316
        %1414 = vmatprep.mubr.f32.mxu0 %v1249
        %1415 = vmatmul.mubr.f32.gmra.mrb[0].mxu0 %v1248
        %v1416 = vpop.f32.mrb[0].mxu0
        %v1417 = vadd.f32 0.0, %v1416
        %v1418 = vpop.f32.mrb[0].mxu0
        %v1419 = vadd.f32 0.0, %v1418
        %1420 = vmatprep.mubr.f32.mxu0 %v1252
        %1421 = vmatmul.mubr.f32.gmra.mrb[0].mxu0 %v1251
        %v1422 = vpop.f32.mrb[0].mxu0
        %v1423 = vadd.f32 0.0, %v1422
        %v1424 = vpop.f32.mrb[0].mxu0
        %v1425 = vadd.f32 0.0, %v1424
        %1426 = vdwg.mxu0
        %1427 = vmatprep.subr.mxu0 %v1319
        %1428 = vmatpush1.msra.mxu0 %v1318
        %1429 = vmatprep.subr.mxu0 %v1321
        %1430 = vmatpush1.msra.mxu0 %v1320
        %1431 = vmatprep.subr.mxu0 %v1323
        %1432 = vmatpush1.msra.mxu0 %v1322
        %1433 = vmatprep.subr.mxu0 %v1325
        %1434 = vmatpush1.msra.mxu0 %v1324
        %1435 = vmatprep.subr.mxu0 %v1327
        %1436 = vmatpush1.msra.mxu0 %v1326
        %1437 = vmatprep.subr.mxu0 %v1329
        %1438 = vmatpush1.msra.mxu0 %v1328
        %1439 = vmatprep.subr.mxu0 %v1331
        %1440 = vmatpush1.msra.mxu0 %v1330
        %1441 = vmatprep.subr.mxu0 %v1333
        %1442 = vmatpush1.msra.mxu0 %v1332
        %1443 = vmatprep.subr.mxu0 %v1335
        %1444 = vmatpush1.msra.mxu0 %v1334
        %1445 = vmatprep.subr.mxu0 %v1337
        %1446 = vmatpush1.msra.mxu0 %v1336
        %1447 = vmatprep.subr.mxu0 %v1339
        %1448 = vmatpush1.msra.mxu0 %v1338
        %1449 = vmatprep.subr.mxu0 %v1341
        %1450 = vmatpush1.msra.mxu0 %v1340
        %1451 = vmatprep.subr.mxu0 %v1343
        %1452 = vmatpush1.msra.mxu0 %v1342
        %1453 = vmatprep.subr.mxu0 %v1345
        %1454 = vmatpush1.msra.mxu0 %v1344
        %1455 = vmatprep.subr.mxu0 %v1347
        %1456 = vmatpush1.msra.mxu0 %v1346
        %1457 = vmatprep.subr.mxu0 %v1349
        %1458 = vmatpush1.msra.mxu0 %v1348
        %1459 = vmatprep.subr.mxu0 0.0
        %1460 = vmatpush1.msra.mxu0 0.0
        %1461 = vmatprep.subr.mxu0 0.0
        %1462 = vmatpush1.msra.mxu0 0.0
        %1463 = vmatprep.subr.mxu0 0.0
        %1464 = vmatpush1.msra.mxu0 0.0
        %1465 = vmatprep.subr.mxu0 0.0
        %1466 = vmatpush1.msra.mxu0 0.0
        %1467 = vmatprep.subr.mxu0 0.0
        %1468 = vmatpush1.msra.mxu0 0.0
        %1469 = vmatprep.subr.mxu0 0.0
        %1470 = vmatpush1.msra.mxu0 0.0
        %1471 = vmatprep.subr.mxu0 0.0
        %1472 = vmatpush1.msra.mxu0 0.0
        %1473 = vmatprep.subr.mxu0 0.0
        %1474 = vmatpush1.msra.mxu0 0.0
        %1475 = vmatprep.subr.mxu0 0.0
        %1476 = vmatpush1.msra.mxu0 0.0
        %1477 = vmatprep.subr.mxu0 0.0
        %1478 = vmatpush1.msra.mxu0 0.0
        %1479 = vmatprep.subr.mxu0 0.0
        %1480 = vmatpush1.msra.mxu0 0.0
        %1481 = vmatprep.subr.mxu0 0.0
        %1482 = vmatpush1.msra.mxu0 0.0
        %1483 = vmatprep.subr.mxu0 0.0
        %1484 = vmatpush1.msra.mxu0 0.0
        %1485 = vmatprep.subr.mxu0 0.0
        %1486 = vmatpush1.msra.mxu0 0.0
        %1487 = vmatprep.subr.mxu0 0.0
        %1488 = vmatpush1.msra.mxu0 0.0
        %1489 = vmatprep.subr.mxu0 0.0
        %1490 = vmatpush1.msra.mxu0 0.0
        %1491 = vmatprep.mubr.f32.mxu0 0.0
        %1492 = vmatmul.mubr.f32.gmra.mrb[0].mxu0 %v1250
        %v1493 = vpop.f32.mrb[0].mxu0
        %v1494 = vadd.f32 %v1417, %v1493
        %v1495 = vpop.f32.mrb[0].mxu0
        %v1496 = vadd.f32 %v1419, %v1495
        %1497 = vmatprep.mubr.f32.mxu0 0.0
        %1498 = vmatmul.mubr.f32.gmra.mrb[0].mxu0 %v1253
        %v1499 = vpop.f32.mrb[0].mxu0
        %v1500 = vadd.f32 %v1423, %v1499
        %v1501 = vpop.f32.mrb[0].mxu0
        %v1502 = vadd.f32 %v1425, %v1501
        %1503 = vdwg.mxu0
        %1504 = vst [vmem:[%s391] sm:$0xff] %v1494
        %1505 = vst [vmem:[%s391 + $0x8] sm:$0xff] %v1496
        %1506 = vst [vmem:[%s391 + $0x10] sm:$0xff] %v1500
        %1507 = vst [vmem:[%s391 + $0x18] sm:$0xff] %v1502
        %s1508 = sand.u32 %s187, 1
        %s1509 = scalar_lea.sflag [#allocation4], %s1508
        %s1510 = sand.u32 %s187, 1
        %s1511 = smul.addr %s1510, 32
        %s1512 = scalar_lea.vmem [#allocation14], %s1511
        // Predicated region
        $region77: #{tpu_custom_call.1} parent=47 // pred_check
          %p1513 = pneg %p197
        $region78: #{tpu_custom_call.1} parent=47 // pred_check_branch
          %1515 = sbr.rel (%p1513) target = $region80
        $region79: #{tpu_custom_call.1} parent=47 // pred_region
          %s1516 = smul.u32 2, %s27
          %s1517 = ssub.s32 5, %s1516
          %p1518 = scmp.lt.s32.totalorder %s1517, 2
          %s1519 = scalar_select %p1518, %s1517, 2
          %s1520 = smul.u32 128, %s1519
          %s1521 = smul.u32 %s1520, 2
          %s1523 = ssub.s32 512, %s1521
          %1524 = vsyncadd %s1509, %s1523
          %p1525 = scmp.ne.s32.totalorder 0, %s1521
          %s1526 = smul.addr %s1516, 2
          %s1527 = smul.addr %s1526, 128
          %s1528 = scalar_lea.hbm %s7, %s1527
          %s1529 = smul.u32 16, %s1519
          %s1530 = sshll.u32 %s1512, 4
          %s1531 = int_to_ptr.vmem [resolvable:$true] %s1530
          %s1532 = sshll.u32 %s1529, 4
          %1536 = dma.vmem_to_hbm [thread:$0]  (%p1525), %s1531, %s1532, %s1528, %s1509, 256, 256, 16
        $region80: #{tpu_custom_call.1} parent=47 // pred_fallthru
          _
      $region48: #{tpu_custom_call.1} parent=5 // pred_fallthru
        _
      %p1537 = scmp.le.s32.totalorder 2, %s22
      // Predicated region
      $region81: #{tpu_custom_call.1} parent=5 // pred_check
        %p1538 = pneg %p1537
      $region82: #{tpu_custom_call.1} parent=5 // pred_check_branch
        %1540 = sbr.rel (%p1538) target = $region84
      $region83: #{tpu_custom_call.1} parent=5 // pred_region
        %s1541 = ssub.s32 %s22, 2
        // Predicated region
        $region85: #{tpu_custom_call.1} parent=83 // pred_check
          %p1542 = pneg %p203
        $region86: #{tpu_custom_call.1} parent=83 // pred_check_branch
          %1544 = sbr.rel (%p1542) target = $region88
        $region87: #{tpu_custom_call.1} parent=83 // pred_region
          %s1545 = sand.u32 %s188, 1
          %s1546 = scalar_lea.sflag [#allocation4], %s1545
          %s1547 = sand.u32 %s188, 1
          %s1548 = smul.addr %s1547, 32
          %s1549 = scalar_lea.vmem [#allocation14], %s1548
          %1550 = dma.done %s1546, 512
        $region88: #{tpu_custom_call.1} parent=83 // pred_fallthru
          _
      $region84: #{tpu_custom_call.1} parent=5 // pred_fallthru
        _
    $region6: #{tpu_custom_call.1} parent=1 // loop_footer
      %s26 = sadd.s32 1, %s22
    $region7: #{tpu_custom_call.1} parent=1 // loop_footer_branch
      %21 = sbr.rel target = $region3
    $region8: #{tpu_custom_call.1} parent=1 // loop_exit
      _
    %1551 = vsyncpa [#allocation3], 1
    %s1552 = scalar_lea.sflag [#allocation3], 1
    %1553 = vsyncpa %s1552, 1
    %1554 = vsyncpa [#allocation6], 1
    %1555 = vsyncpa [#allocation9], 1
    %1556 = vsyncpa [#allocation12], 1
    %1557 = vsyncpa [#allocation4], 1
    %s1558 = scalar_lea.sflag [#allocation4], 1
    %1559 = vsyncpa %s1558, 1

</llo_original>
